<compile_context>
chip_gen: v5e
topology: v5e:2x2
jax: 0.10.0
libtpu: 0.0.40
codegen_flags: <defaults>
</compile_context>

<pallas_src>
import jax
import jax.numpy as jnp
import numpy as np
from jax.experimental import pallas as pl
from jax.experimental.pallas import tpu as pltpu


# ----------------------------------------------------------------------------
# Fused kernel: conv1+BN1+ReLU+pool1 -> conv2+BN2+ReLU+pool2 -> flatten(+sup)
#               -> fc1+ReLU -> fc.   One batch element per grid step.
# ----------------------------------------------------------------------------
def pamap_fused_kernel(x_ref, sup_ref, w1_ref, b1_ref, w2_ref, b2_ref,
                       s1_ref, s2_ref, wf1_ref, bf1_ref, wf2_ref, bf2_ref,
                       o_ref):
    # x:   (1, Cinp, W)            w1: (K1, C1, Cinp)   b1: (C1, 1)
    # sup: (1, 1, C2*P2)           w2: (K2, C2, C1)     b2: (C2, 1)
    # s1:  (W1, P1)  s2: (W2, P2)  wf1:(C2*P2, H)  bf1:(1,H)  wf2:(H,O) bf2:(1,O)
    # o:   (1, 1, O)
    K1, _, _ = w1_ref.shape
    K2, C2, _ = w2_ref.shape
    W = x_ref.shape[-1]
    W1 = W - K1 + 1                    # conv1 output width
    P1 = W1 // 2                       # pool1 output width
    W2 = P1 - K2 + 1                   # conv2 output width

    x = x_ref[0].astype(jnp.float32)                                     # (Cinp, W)

    # ---- conv1 (BN1 folded) as K1 shift-accumulate matmuls -------------------
    h1 = jnp.dot(w1_ref[0], x[:, 0:W1], preferred_element_type=jnp.float32)
    for k in range(1, K1):
        h1 = h1 + jnp.dot(w1_ref[k], x[:, k:k + W1],
                          preferred_element_type=jnp.float32)
    h1 = jnp.maximum(h1 + b1_ref[...], 0.0)                              # (C1, W1)

    # ---- MaxPool(1,2)/2: pairwise max (lane shift) + even-column selector ----
    h1n = jnp.concatenate([h1[:, 1:], h1[:, :1]], axis=1)                # h1[:, i+1]
    m1 = jnp.maximum(h1, h1n)
    q1 = jnp.dot(m1, s1_ref[...], preferred_element_type=jnp.float32)    # (C1, P1)

    # ---- conv2 (BN2 folded) ---------------------------------------------------
    h2 = jnp.dot(w2_ref[0], q1[:, 0:W2], preferred_element_type=jnp.float32)
    for k in range(1, K2):
        h2 = h2 + jnp.dot(w2_ref[k], q1[:, k:k + W2],
                          preferred_element_type=jnp.float32)
    h2 = jnp.maximum(h2 + b2_ref[...], 0.0)                              # (C2, W2)

    h2n = jnp.concatenate([h2[:, 1:], h2[:, :1]], axis=1)
    m2 = jnp.maximum(h2, h2n)
    q2 = jnp.dot(m2, s2_ref[...], preferred_element_type=jnp.float32)    # (C2, P2)

    # ---- flatten in torch reshape order (channel-major), add sup -------------
    flat = jnp.concatenate([q2[c:c + 1, :] for c in range(C2)], axis=1)  # (1, C2*P2)
    flat = flat + sup_ref[0]

    # ---- fc1 + ReLU + fc ------------------------------------------------------
    f = jnp.dot(flat, wf1_ref[...], preferred_element_type=jnp.float32) + bf1_ref[...]
    f = jnp.maximum(f, 0.0)
    out = jnp.dot(f, wf2_ref[...], preferred_element_type=jnp.float32) + bf2_ref[...]
    o_ref[0] = out.astype(o_ref.dtype)


def pamap_fused_call(x_p, sup3, w1, b1, w2, b2, s1, s2, wf1, bf1, wf2, bf2):
    B = x_p.shape[0]
    O = wf2.shape[1]

    def rep(a):  # weight-like input: full block, constant index map (resident)
        nd = a.ndim
        return pl.BlockSpec(a.shape, lambda b, _nd=nd: (0,) * _nd)

    return pl.pallas_call(
        pamap_fused_kernel,
        out_shape=jax.ShapeDtypeStruct((B, 1, O), x_p.dtype),
        grid_spec=pltpu.PrefetchScalarGridSpec(
            num_scalar_prefetch=0,
            grid=(B,),  # one batch element per step; "parallel" -> v7x 2-TC shard
            in_specs=[
                pl.BlockSpec((1,) + x_p.shape[1:], lambda b: (b, 0, 0)),
                pl.BlockSpec((1, 1, sup3.shape[-1]), lambda b: (b, 0, 0)),
                rep(w1), rep(b1), rep(w2), rep(b2),
                rep(s1), rep(s2), rep(wf1), rep(bf1), rep(wf2), rep(bf2),
            ],
            out_specs=pl.BlockSpec((1, 1, O), lambda b: (b, 0, 0)),
        ),
        compiler_params=pltpu.CompilerParams(
            dimension_semantics=("parallel",)),
    )(x_p, sup3, w1, b1, w2, b2, s1, s2, wf1, bf1, wf2, bf2)


# ----------------------------------------------------------------------------
# One-time host-side parameter preparation (hoisted out of the forward path)
# ----------------------------------------------------------------------------
def _fold_bn(w, b, gamma, beta, mean, var, eps=1e-5):
    # w: (O, C, K) -- eval-mode BN folded into conv weight / bias.
    scale = gamma / jnp.sqrt(var + eps)
    return w * scale[:, None, None], (b - mean) * scale + beta


def _even_selector(n_in, n_out):
    rows = np.arange(n_in)[:, None]
    cols = np.arange(n_out)[None, :]
    return jnp.asarray((rows == 2 * cols).astype(np.float32))


def prepare_params(params, input_width=200, cin_pad=32, eps=1e-5):
    """Fold BN, pad Cin to 32, lay out conv weights as (K, Cout, Cin),
    pre-transpose FC weights and build the pooling selector matrices."""
    w1 = params["conv1_w"][:, :, 0, :]                 # (16, 27, 9)
    w2 = params["conv2_w"][:, :, 0, :]                 # (32, 16, 9)
    w1f, b1f = _fold_bn(w1, params["conv1_b"], params["bn1_gamma"],
                        params["bn1_beta"], params["bn1_mean"],
                        params["bn1_var"], eps)
    w2f, b2f = _fold_bn(w2, params["conv2_b"], params["bn2_gamma"],
                        params["bn2_beta"], params["bn2_mean"],
                        params["bn2_var"], eps)

    C1, Cin, K1 = w1f.shape
    C2, _, K2 = w2f.shape
    W1 = input_width - K1 + 1
    P1 = W1 // 2
    W2 = P1 - K2 + 1
    P2 = W2 // 2
    assert W1 % 2 == 0 and W2 % 2 == 0, "conv output widths must be even for this pool"
    assert C2 * P2 == params["fc1_w"].shape[1]
    assert cin_pad >= Cin

    # Zero-pad Cin 27 -> 32 so the conv contraction dim is sublane-aligned.
    w1p = jnp.zeros((C1, cin_pad, K1), jnp.float32).at[:, :Cin, :].set(w1f)

    return {
        "w1": jnp.transpose(w1p, (2, 0, 1)),                       # (K1, C1, 32)
        "b1": b1f.reshape(-1, 1).astype(jnp.float32),              # (C1, 1)
        "w2": jnp.transpose(w2f, (2, 0, 1)).astype(jnp.float32),   # (K2, C2, C1)
        "b2": b2f.reshape(-1, 1).astype(jnp.float32),              # (C2, 1)
        "s1": _even_selector(W1, P1),                              # (192, 96)
        "s2": _even_selector(W2, P2),                              # (88, 44)
        "wf1": params["fc1_w"].T.astype(jnp.float32),              # (1408, H)
        "bf1": params["fc1_b"].reshape(1, -1).astype(jnp.float32),
        "wf2": params["fc_w"].T.astype(jnp.float32),               # (H, O)
        "bf2": params["fc_b"].reshape(1, -1).astype(jnp.float32),
    }


def pamap_forward(prep, x, sup=None):
    """x: (B, 27, 1, W) -> logits (B, out_dim).  `prep` from prepare_params()."""
    B = x.shape[0]
    x3 = x[:, :, 0, :].astype(jnp.float32)             # (B, 27, W); H dim is 1
    cin_pad = prep["w1"].shape[-1]
    x_p = jnp.pad(x3, ((0, 0), (0, cin_pad - x3.shape[1]), (0, 0)))
    F = prep["wf1"].shape[0]
    if sup is None:                                     # torch: sup defaults to zeros
        sup3 = jnp.zeros((B, 1, F), jnp.float32)
    else:
        sup3 = sup.reshape(B, 1, F).astype(jnp.float32)
    out3 = pamap_fused_call(x_p, sup3, prep["w1"], prep["b1"], prep["w2"],
                            prep["b2"], prep["s1"], prep["s2"], prep["wf1"],
                            prep["bf1"], prep["wf2"], prep["bf2"])
    return out3[:, 0, :]


# ----------------------------------------------------------------------------
# Pure-JAX reference mirroring the PyTorch forward (eval-mode BN)
# ----------------------------------------------------------------------------
def pamap_reference(params, x, sup=None, eps=1e-5):
    def conv_1xk(x4, w, b):
        K = w.shape[-1]
        wout = x4.shape[-1] - K + 1
        cols = jnp.stack([x4[:, :, 0, k:k + wout] for k in range(K)], axis=-1)
        y = jnp.einsum("bcwk,ock->bow", cols, w[:, :, 0, :]) + b[None, :, None]
        return y[:, :, None, :]

    def bn(x4, gamma, beta, mean, var):
        return ((x4 - mean[None, :, None, None])
                / jnp.sqrt(var[None, :, None, None] + eps)
                * gamma[None, :, None, None] + beta[None, :, None, None])

    def pool_1x2_s2(x4):
        return jnp.maximum(x4[:, :, :, 0::2], x4[:, :, :, 1::2])

    h = conv_1xk(x, params["conv1_w"], params["conv1_b"])
    h = pool_1x2_s2(jax.nn.relu(bn(h, params["bn1_gamma"], params["bn1_beta"],
                                   params["bn1_mean"], params["bn1_var"])))
    h = conv_1xk(h, params["conv2_w"], params["conv2_b"])
    h = pool_1x2_s2(jax.nn.relu(bn(h, params["bn2_gamma"], params["bn2_beta"],
                                   params["bn2_mean"], params["bn2_var"])))
    flat = h.reshape(x.shape[0], -1)
    if sup is not None:
        flat = flat + sup
    feat = jax.nn.relu(flat @ params["fc1_w"].T + params["fc1_b"])
    return feat @ params["fc_w"].T + params["fc_b"]


if __name__ == "__main__":
    B, n_feature, out_dim = 2, 64, 10
    key = jax.random.PRNGKey(0)
    ks = jax.random.split(key, 18)

    x = jax.random.normal(ks[0], (B, 27, 1, 200), dtype=jnp.float32)
    params = {
        "conv1_w": 0.1 * jax.random.normal(ks[1], (16, 27, 1, 9), jnp.float32),
        "conv1_b": 0.1 * jax.random.normal(ks[2], (16,), jnp.float32),
        "bn1_gamma": 1.0 + 0.1 * jax.random.normal(ks[3], (16,), jnp.float32),
        "bn1_beta": 0.1 * jax.random.normal(ks[4], (16,), jnp.float32),
        "bn1_mean": 0.1 * jax.random.normal(ks[5], (16,), jnp.float32),
        "bn1_var": 0.5 + jnp.abs(jax.random.normal(ks[6], (16,), jnp.float32)),
        "conv2_w": 0.1 * jax.random.normal(ks[7], (32, 16, 1, 9), jnp.float32),
        "conv2_b": 0.1 * jax.random.normal(ks[8], (32,), jnp.float32),
        "bn2_gamma": 1.0 + 0.1 * jax.random.normal(ks[9], (32,), jnp.float32),
        "bn2_beta": 0.1 * jax.random.normal(ks[10], (32,), jnp.float32),
        "bn2_mean": 0.1 * jax.random.normal(ks[11], (32,), jnp.float32),
        "bn2_var": 0.5 + jnp.abs(jax.random.normal(ks[12], (32,), jnp.float32)),
        "fc1_w": 0.05 * jax.random.normal(ks[13], (n_feature, 32 * 44), jnp.float32),
        "fc1_b": 0.1 * jax.random.normal(ks[14], (n_feature,), jnp.float32),
        "fc_w": 0.1 * jax.random.normal(ks[15], (out_dim, n_feature), jnp.float32),
        "fc_b": 0.1 * jax.random.normal(ks[16], (out_dim,), jnp.float32),
    }

    prep = prepare_params(params)               # one-time host prep (cacheable)
    fwd = jax.jit(pamap_forward)

    # sup=None path (torch default: sup -> zeros)
    out = jax.block_until_ready(fwd(prep, x))
    ref = jax.block_until_ready(pamap_reference(params, x))
    np.testing.assert_allclose(np.asarray(out), np.asarray(ref), rtol=1e-4, atol=1e-4)

    # explicit sup path
    sup = 0.1 * jax.random.normal(ks[17], (B, 32 * 44), jnp.float32)
    out_s = jax.block_until_ready(fwd(prep, x, sup))
    ref_s = jax.block_until_ready(pamap_reference(params, x, sup))
    np.testing.assert_allclose(np.asarray(out_s), np.asarray(ref_s), rtol=1e-4, atol=1e-4)

    print("KERNEL_OK")
</pallas_src>

<mosaic_0001>
module attributes {stable_mosaic.version = 11 : i64} {
  func.func @pamap_fused_kernel(%arg0: i32, %arg1: memref<1x32x200xf32, #tpu.memory_space<vmem>>, %arg2: memref<1x1x1408xf32, #tpu.memory_space<vmem>>, %arg3: memref<9x16x32xf32, #tpu.memory_space<vmem>>, %arg4: memref<16x1xf32, #tpu.memory_space<vmem>>, %arg5: memref<9x32x16xf32, #tpu.memory_space<vmem>>, %arg6: memref<32x1xf32, #tpu.memory_space<vmem>>, %arg7: memref<192x96xf32, #tpu.memory_space<vmem>>, %arg8: memref<88x44xf32, #tpu.memory_space<vmem>>, %arg9: memref<1408x64xf32, #tpu.memory_space<vmem>>, %arg10: memref<1x64xf32, #tpu.memory_space<vmem>>, %arg11: memref<64x10xf32, #tpu.memory_space<vmem>>, %arg12: memref<1x10xf32, #tpu.memory_space<vmem>>, %arg13: memref<1x1x10xf32, #tpu.memory_space<vmem>>) attributes {dimension_semantics = [#tpu.dimension_semantics<parallel>], iteration_bounds = array<i64: 2>, scalar_prefetch = 0 : i64, scratch_operands = 0 : i64, tpu.core_type = #tpu.core_type<tc>, window_params = [{transform_indices = @transform_0, window_bounds = array<i64: 1, 32, 200>}, {transform_indices = @transform_1, window_bounds = array<i64: 1, 1, 1408>}, {pipeline_mode = #tpu.pipeline_mode<synchronous>, transform_indices = @transform_2, window_bounds = array<i64: 9, 16, 32>}, {pipeline_mode = #tpu.pipeline_mode<synchronous>, transform_indices = @transform_3, window_bounds = array<i64: 16, 1>}, {pipeline_mode = #tpu.pipeline_mode<synchronous>, transform_indices = @transform_4, window_bounds = array<i64: 9, 32, 16>}, {pipeline_mode = #tpu.pipeline_mode<synchronous>, transform_indices = @transform_5, window_bounds = array<i64: 32, 1>}, {pipeline_mode = #tpu.pipeline_mode<synchronous>, transform_indices = @transform_6, window_bounds = array<i64: 192, 96>}, {pipeline_mode = #tpu.pipeline_mode<synchronous>, transform_indices = @transform_7, window_bounds = array<i64: 88, 44>}, {pipeline_mode = #tpu.pipeline_mode<synchronous>, transform_indices = @transform_8, window_bounds = array<i64: 1408, 64>}, {pipeline_mode = #tpu.pipeline_mode<synchronous>, transform_indices = @transform_9, window_bounds = array<i64: 1, 64>}, {pipeline_mode = #tpu.pipeline_mode<synchronous>, transform_indices = @transform_10, window_bounds = array<i64: 64, 10>}, {pipeline_mode = #tpu.pipeline_mode<synchronous>, transform_indices = @transform_11, window_bounds = array<i64: 1, 10>}, {transform_indices = @transform_12, window_bounds = array<i64: 1, 1, 10>}]} {
    %c0 = arith.constant 0 : index
    %c0_0 = arith.constant 0 : index
    %c0_1 = arith.constant 0 : index
    %0 = vector.load %arg1[%c0, %c0_0, %c0_1] : memref<1x32x200xf32, #tpu.memory_space<vmem>>, vector<1x32x200xf32>
    %1 = vector.shape_cast %0 : vector<1x32x200xf32> to vector<32x200xf32>
    %c0_2 = arith.constant 0 : index
    %c0_3 = arith.constant 0 : index
    %c0_4 = arith.constant 0 : index
    %2 = vector.load %arg3[%c0_2, %c0_3, %c0_4] : memref<9x16x32xf32, #tpu.memory_space<vmem>>, vector<1x16x32xf32>
    %3 = vector.shape_cast %2 : vector<1x16x32xf32> to vector<16x32xf32>
    %4 = vector.extract_strided_slice %1 {offsets = [0, 0], sizes = [32, 192], strides = [1, 1]} : vector<32x200xf32> to vector<32x192xf32>
    %cst = arith.constant dense<0.000000e+00> : vector<16x192xf32>
    %5 = tpu.matmul %3, %4, %cst {dimension_numbers = #tpu.dot_dimension_numbers<[1], [0], [0], [1], [0, 0, 1, 1], [], []>} : vector<16x32xf32>, vector<32x192xf32>, vector<16x192xf32> -> vector<16x192xf32>
    %c1 = arith.constant 1 : index
    %c0_5 = arith.constant 0 : index
    %c0_6 = arith.constant 0 : index
    %6 = vector.load %arg3[%c1, %c0_5, %c0_6] : memref<9x16x32xf32, #tpu.memory_space<vmem>>, vector<1x16x32xf32>
    %7 = vector.shape_cast %6 : vector<1x16x32xf32> to vector<16x32xf32>
    %8 = vector.extract_strided_slice %1 {offsets = [0, 1], sizes = [32, 192], strides = [1, 1]} : vector<32x200xf32> to vector<32x192xf32>
    %cst_7 = arith.constant dense<0.000000e+00> : vector<16x192xf32>
    %9 = tpu.matmul %7, %8, %cst_7 {dimension_numbers = #tpu.dot_dimension_numbers<[1], [0], [0], [1], [0, 0, 1, 1], [], []>} : vector<16x32xf32>, vector<32x192xf32>, vector<16x192xf32> -> vector<16x192xf32>
    %10 = arith.addf %5, %9 : vector<16x192xf32>
    %c2 = arith.constant 2 : index
    %c0_8 = arith.constant 0 : index
    %c0_9 = arith.constant 0 : index
    %11 = vector.load %arg3[%c2, %c0_8, %c0_9] : memref<9x16x32xf32, #tpu.memory_space<vmem>>, vector<1x16x32xf32>
    %12 = vector.shape_cast %11 : vector<1x16x32xf32> to vector<16x32xf32>
    %13 = vector.extract_strided_slice %1 {offsets = [0, 2], sizes = [32, 192], strides = [1, 1]} : vector<32x200xf32> to vector<32x192xf32>
    %cst_10 = arith.constant dense<0.000000e+00> : vector<16x192xf32>
    %14 = tpu.matmul %12, %13, %cst_10 {dimension_numbers = #tpu.dot_dimension_numbers<[1], [0], [0], [1], [0, 0, 1, 1], [], []>} : vector<16x32xf32>, vector<32x192xf32>, vector<16x192xf32> -> vector<16x192xf32>
    %15 = arith.addf %10, %14 : vector<16x192xf32>
    %c3 = arith.constant 3 : index
    %c0_11 = arith.constant 0 : index
    %c0_12 = arith.constant 0 : index
    %16 = vector.load %arg3[%c3, %c0_11, %c0_12] : memref<9x16x32xf32, #tpu.memory_space<vmem>>, vector<1x16x32xf32>
    %17 = vector.shape_cast %16 : vector<1x16x32xf32> to vector<16x32xf32>
    %18 = vector.extract_strided_slice %1 {offsets = [0, 3], sizes = [32, 192], strides = [1, 1]} : vector<32x200xf32> to vector<32x192xf32>
    %cst_13 = arith.constant dense<0.000000e+00> : vector<16x192xf32>
    %19 = tpu.matmul %17, %18, %cst_13 {dimension_numbers = #tpu.dot_dimension_numbers<[1], [0], [0], [1], [0, 0, 1, 1], [], []>} : vector<16x32xf32>, vector<32x192xf32>, vector<16x192xf32> -> vector<16x192xf32>
    %20 = arith.addf %15, %19 : vector<16x192xf32>
    %c4 = arith.constant 4 : index
    %c0_14 = arith.constant 0 : index
    %c0_15 = arith.constant 0 : index
    %21 = vector.load %arg3[%c4, %c0_14, %c0_15] : memref<9x16x32xf32, #tpu.memory_space<vmem>>, vector<1x16x32xf32>
    %22 = vector.shape_cast %21 : vector<1x16x32xf32> to vector<16x32xf32>
    %23 = vector.extract_strided_slice %1 {offsets = [0, 4], sizes = [32, 192], strides = [1, 1]} : vector<32x200xf32> to vector<32x192xf32>
    %cst_16 = arith.constant dense<0.000000e+00> : vector<16x192xf32>
    %24 = tpu.matmul %22, %23, %cst_16 {dimension_numbers = #tpu.dot_dimension_numbers<[1], [0], [0], [1], [0, 0, 1, 1], [], []>} : vector<16x32xf32>, vector<32x192xf32>, vector<16x192xf32> -> vector<16x192xf32>
    %25 = arith.addf %20, %24 : vector<16x192xf32>
    %c5 = arith.constant 5 : index
    %c0_17 = arith.constant 0 : index
    %c0_18 = arith.constant 0 : index
    %26 = vector.load %arg3[%c5, %c0_17, %c0_18] : memref<9x16x32xf32, #tpu.memory_space<vmem>>, vector<1x16x32xf32>
    %27 = vector.shape_cast %26 : vector<1x16x32xf32> to vector<16x32xf32>
    %28 = vector.extract_strided_slice %1 {offsets = [0, 5], sizes = [32, 192], strides = [1, 1]} : vector<32x200xf32> to vector<32x192xf32>
    %cst_19 = arith.constant dense<0.000000e+00> : vector<16x192xf32>
    %29 = tpu.matmul %27, %28, %cst_19 {dimension_numbers = #tpu.dot_dimension_numbers<[1], [0], [0], [1], [0, 0, 1, 1], [], []>} : vector<16x32xf32>, vector<32x192xf32>, vector<16x192xf32> -> vector<16x192xf32>
    %30 = arith.addf %25, %29 : vector<16x192xf32>
    %c6 = arith.constant 6 : index
    %c0_20 = arith.constant 0 : index
    %c0_21 = arith.constant 0 : index
    %31 = vector.load %arg3[%c6, %c0_20, %c0_21] : memref<9x16x32xf32, #tpu.memory_space<vmem>>, vector<1x16x32xf32>
    %32 = vector.shape_cast %31 : vector<1x16x32xf32> to vector<16x32xf32>
    %33 = vector.extract_strided_slice %1 {offsets = [0, 6], sizes = [32, 192], strides = [1, 1]} : vector<32x200xf32> to vector<32x192xf32>
    %cst_22 = arith.constant dense<0.000000e+00> : vector<16x192xf32>
    %34 = tpu.matmul %32, %33, %cst_22 {dimension_numbers = #tpu.dot_dimension_numbers<[1], [0], [0], [1], [0, 0, 1, 1], [], []>} : vector<16x32xf32>, vector<32x192xf32>, vector<16x192xf32> -> vector<16x192xf32>
    %35 = arith.addf %30, %34 : vector<16x192xf32>
    %c7 = arith.constant 7 : index
    %c0_23 = arith.constant 0 : index
    %c0_24 = arith.constant 0 : index
    %36 = vector.load %arg3[%c7, %c0_23, %c0_24] : memref<9x16x32xf32, #tpu.memory_space<vmem>>, vector<1x16x32xf32>
    %37 = vector.shape_cast %36 : vector<1x16x32xf32> to vector<16x32xf32>
    %38 = vector.extract_strided_slice %1 {offsets = [0, 7], sizes = [32, 192], strides = [1, 1]} : vector<32x200xf32> to vector<32x192xf32>
    %cst_25 = arith.constant dense<0.000000e+00> : vector<16x192xf32>
    %39 = tpu.matmul %37, %38, %cst_25 {dimension_numbers = #tpu.dot_dimension_numbers<[1], [0], [0], [1], [0, 0, 1, 1], [], []>} : vector<16x32xf32>, vector<32x192xf32>, vector<16x192xf32> -> vector<16x192xf32>
    %40 = arith.addf %35, %39 : vector<16x192xf32>
    %c8 = arith.constant 8 : index
    %c0_26 = arith.constant 0 : index
    %c0_27 = arith.constant 0 : index
    %41 = vector.load %arg3[%c8, %c0_26, %c0_27] : memref<9x16x32xf32, #tpu.memory_space<vmem>>, vector<1x16x32xf32>
    %42 = vector.shape_cast %41 : vector<1x16x32xf32> to vector<16x32xf32>
    %43 = vector.extract_strided_slice %1 {offsets = [0, 8], sizes = [32, 192], strides = [1, 1]} : vector<32x200xf32> to vector<32x192xf32>
    %cst_28 = arith.constant dense<0.000000e+00> : vector<16x192xf32>
    %44 = tpu.matmul %42, %43, %cst_28 {dimension_numbers = #tpu.dot_dimension_numbers<[1], [0], [0], [1], [0, 0, 1, 1], [], []>} : vector<16x32xf32>, vector<32x192xf32>, vector<16x192xf32> -> vector<16x192xf32>
    %45 = arith.addf %40, %44 : vector<16x192xf32>
    %c0_29 = arith.constant 0 : index
    %c0_30 = arith.constant 0 : index
    %46 = vector.load %arg4[%c0_29, %c0_30] : memref<16x1xf32, #tpu.memory_space<vmem>>, vector<16x1xf32>
    %47 = vector.broadcast %46 : vector<16x1xf32> to vector<16x192xf32>
    %48 = arith.addf %45, %47 : vector<16x192xf32>
    %cst_31 = arith.constant 0.000000e+00 : f32
    %49 = vector.broadcast %cst_31 : f32 to vector<16x192xf32>
    %50 = arith.maximumf %48, %49 : vector<16x192xf32>
    %51 = vector.extract_strided_slice %50 {offsets = [0, 1], sizes = [16, 191], strides = [1, 1]} : vector<16x192xf32> to vector<16x191xf32>
    %52 = vector.extract_strided_slice %50 {offsets = [0, 0], sizes = [16, 1], strides = [1, 1]} : vector<16x192xf32> to vector<16x1xf32>
    %53 = tpu.concatenate %51, %52 in 1 : vector<16x191xf32>, vector<16x1xf32> -> vector<16x192xf32>
    %54 = arith.maximumf %50, %53 : vector<16x192xf32>
    %c0_32 = arith.constant 0 : index
    %c0_33 = arith.constant 0 : index
    %55 = vector.load %arg7[%c0_32, %c0_33] : memref<192x96xf32, #tpu.memory_space<vmem>>, vector<192x96xf32>
    %cst_34 = arith.constant dense<0.000000e+00> : vector<16x96xf32>
    %56 = tpu.matmul %54, %55, %cst_34 {dimension_numbers = #tpu.dot_dimension_numbers<[1], [0], [0], [1], [0, 0, 1, 1], [], []>} : vector<16x192xf32>, vector<192x96xf32>, vector<16x96xf32> -> vector<16x96xf32>
    %c0_35 = arith.constant 0 : index
    %c0_36 = arith.constant 0 : index
    %c0_37 = arith.constant 0 : index
    %57 = vector.load %arg5[%c0_35, %c0_36, %c0_37] : memref<9x32x16xf32, #tpu.memory_space<vmem>>, vector<1x32x16xf32>
    %58 = vector.shape_cast %57 : vector<1x32x16xf32> to vector<32x16xf32>
    %59 = vector.extract_strided_slice %56 {offsets = [0, 0], sizes = [16, 88], strides = [1, 1]} : vector<16x96xf32> to vector<16x88xf32>
    %cst_38 = arith.constant dense<0.000000e+00> : vector<32x88xf32>
    %60 = tpu.matmul %58, %59, %cst_38 {dimension_numbers = #tpu.dot_dimension_numbers<[1], [0], [0], [1], [0, 0, 1, 1], [], []>} : vector<32x16xf32>, vector<16x88xf32>, vector<32x88xf32> -> vector<32x88xf32>
    %c1_39 = arith.constant 1 : index
    %c0_40 = arith.constant 0 : index
    %c0_41 = arith.constant 0 : index
    %61 = vector.load %arg5[%c1_39, %c0_40, %c0_41] : memref<9x32x16xf32, #tpu.memory_space<vmem>>, vector<1x32x16xf32>
    %62 = vector.shape_cast %61 : vector<1x32x16xf32> to vector<32x16xf32>
    %63 = vector.extract_strided_slice %56 {offsets = [0, 1], sizes = [16, 88], strides = [1, 1]} : vector<16x96xf32> to vector<16x88xf32>
    %cst_42 = arith.constant dense<0.000000e+00> : vector<32x88xf32>
    %64 = tpu.matmul %62, %63, %cst_42 {dimension_numbers = #tpu.dot_dimension_numbers<[1], [0], [0], [1], [0, 0, 1, 1], [], []>} : vector<32x16xf32>, vector<16x88xf32>, vector<32x88xf32> -> vector<32x88xf32>
    %65 = arith.addf %60, %64 : vector<32x88xf32>
    %c2_43 = arith.constant 2 : index
    %c0_44 = arith.constant 0 : index
    %c0_45 = arith.constant 0 : index
    %66 = vector.load %arg5[%c2_43, %c0_44, %c0_45] : memref<9x32x16xf32, #tpu.memory_space<vmem>>, vector<1x32x16xf32>
    %67 = vector.shape_cast %66 : vector<1x32x16xf32> to vector<32x16xf32>
    %68 = vector.extract_strided_slice %56 {offsets = [0, 2], sizes = [16, 88], strides = [1, 1]} : vector<16x96xf32> to vector<16x88xf32>
    %cst_46 = arith.constant dense<0.000000e+00> : vector<32x88xf32>
    %69 = tpu.matmul %67, %68, %cst_46 {dimension_numbers = #tpu.dot_dimension_numbers<[1], [0], [0], [1], [0, 0, 1, 1], [], []>} : vector<32x16xf32>, vector<16x88xf32>, vector<32x88xf32> -> vector<32x88xf32>
    %70 = arith.addf %65, %69 : vector<32x88xf32>
    %c3_47 = arith.constant 3 : index
    %c0_48 = arith.constant 0 : index
    %c0_49 = arith.constant 0 : index
    %71 = vector.load %arg5[%c3_47, %c0_48, %c0_49] : memref<9x32x16xf32, #tpu.memory_space<vmem>>, vector<1x32x16xf32>
    %72 = vector.shape_cast %71 : vector<1x32x16xf32> to vector<32x16xf32>
    %73 = vector.extract_strided_slice %56 {offsets = [0, 3], sizes = [16, 88], strides = [1, 1]} : vector<16x96xf32> to vector<16x88xf32>
    %cst_50 = arith.constant dense<0.000000e+00> : vector<32x88xf32>
    %74 = tpu.matmul %72, %73, %cst_50 {dimension_numbers = #tpu.dot_dimension_numbers<[1], [0], [0], [1], [0, 0, 1, 1], [], []>} : vector<32x16xf32>, vector<16x88xf32>, vector<32x88xf32> -> vector<32x88xf32>
    %75 = arith.addf %70, %74 : vector<32x88xf32>
    %c4_51 = arith.constant 4 : index
    %c0_52 = arith.constant 0 : index
    %c0_53 = arith.constant 0 : index
    %76 = vector.load %arg5[%c4_51, %c0_52, %c0_53] : memref<9x32x16xf32, #tpu.memory_space<vmem>>, vector<1x32x16xf32>
    %77 = vector.shape_cast %76 : vector<1x32x16xf32> to vector<32x16xf32>
    %78 = vector.extract_strided_slice %56 {offsets = [0, 4], sizes = [16, 88], strides = [1, 1]} : vector<16x96xf32> to vector<16x88xf32>
    %cst_54 = arith.constant dense<0.000000e+00> : vector<32x88xf32>
    %79 = tpu.matmul %77, %78, %cst_54 {dimension_numbers = #tpu.dot_dimension_numbers<[1], [0], [0], [1], [0, 0, 1, 1], [], []>} : vector<32x16xf32>, vector<16x88xf32>, vector<32x88xf32> -> vector<32x88xf32>
    %80 = arith.addf %75, %79 : vector<32x88xf32>
    %c5_55 = arith.constant 5 : index
    %c0_56 = arith.constant 0 : index
    %c0_57 = arith.constant 0 : index
    %81 = vector.load %arg5[%c5_55, %c0_56, %c0_57] : memref<9x32x16xf32, #tpu.memory_space<vmem>>, vector<1x32x16xf32>
    %82 = vector.shape_cast %81 : vector<1x32x16xf32> to vector<32x16xf32>
    %83 = vector.extract_strided_slice %56 {offsets = [0, 5], sizes = [16, 88], strides = [1, 1]} : vector<16x96xf32> to vector<16x88xf32>
    %cst_58 = arith.constant dense<0.000000e+00> : vector<32x88xf32>
    %84 = tpu.matmul %82, %83, %cst_58 {dimension_numbers = #tpu.dot_dimension_numbers<[1], [0], [0], [1], [0, 0, 1, 1], [], []>} : vector<32x16xf32>, vector<16x88xf32>, vector<32x88xf32> -> vector<32x88xf32>
    %85 = arith.addf %80, %84 : vector<32x88xf32>
    %c6_59 = arith.constant 6 : index
    %c0_60 = arith.constant 0 : index
    %c0_61 = arith.constant 0 : index
    %86 = vector.load %arg5[%c6_59, %c0_60, %c0_61] : memref<9x32x16xf32, #tpu.memory_space<vmem>>, vector<1x32x16xf32>
    %87 = vector.shape_cast %86 : vector<1x32x16xf32> to vector<32x16xf32>
    %88 = vector.extract_strided_slice %56 {offsets = [0, 6], sizes = [16, 88], strides = [1, 1]} : vector<16x96xf32> to vector<16x88xf32>
    %cst_62 = arith.constant dense<0.000000e+00> : vector<32x88xf32>
    %89 = tpu.matmul %87, %88, %cst_62 {dimension_numbers = #tpu.dot_dimension_numbers<[1], [0], [0], [1], [0, 0, 1, 1], [], []>} : vector<32x16xf32>, vector<16x88xf32>, vector<32x88xf32> -> vector<32x88xf32>
    %90 = arith.addf %85, %89 : vector<32x88xf32>
    %c7_63 = arith.constant 7 : index
    %c0_64 = arith.constant 0 : index
    %c0_65 = arith.constant 0 : index
    %91 = vector.load %arg5[%c7_63, %c0_64, %c0_65] : memref<9x32x16xf32, #tpu.memory_space<vmem>>, vector<1x32x16xf32>
    %92 = vector.shape_cast %91 : vector<1x32x16xf32> to vector<32x16xf32>
    %93 = vector.extract_strided_slice %56 {offsets = [0, 7], sizes = [16, 88], strides = [1, 1]} : vector<16x96xf32> to vector<16x88xf32>
    %cst_66 = arith.constant dense<0.000000e+00> : vector<32x88xf32>
    %94 = tpu.matmul %92, %93, %cst_66 {dimension_numbers = #tpu.dot_dimension_numbers<[1], [0], [0], [1], [0, 0, 1, 1], [], []>} : vector<32x16xf32>, vector<16x88xf32>, vector<32x88xf32> -> vector<32x88xf32>
    %95 = arith.addf %90, %94 : vector<32x88xf32>
    %c8_67 = arith.constant 8 : index
    %c0_68 = arith.constant 0 : index
    %c0_69 = arith.constant 0 : index
    %96 = vector.load %arg5[%c8_67, %c0_68, %c0_69] : memref<9x32x16xf32, #tpu.memory_space<vmem>>, vector<1x32x16xf32>
    %97 = vector.shape_cast %96 : vector<1x32x16xf32> to vector<32x16xf32>
    %98 = vector.extract_strided_slice %56 {offsets = [0, 8], sizes = [16, 88], strides = [1, 1]} : vector<16x96xf32> to vector<16x88xf32>
    %cst_70 = arith.constant dense<0.000000e+00> : vector<32x88xf32>
    %99 = tpu.matmul %97, %98, %cst_70 {dimension_numbers = #tpu.dot_dimension_numbers<[1], [0], [0], [1], [0, 0, 1, 1], [], []>} : vector<32x16xf32>, vector<16x88xf32>, vector<32x88xf32> -> vector<32x88xf32>
    %100 = arith.addf %95, %99 : vector<32x88xf32>
    %c0_71 = arith.constant 0 : index
    %c0_72 = arith.constant 0 : index
    %101 = vector.load %arg6[%c0_71, %c0_72] : memref<32x1xf32, #tpu.memory_space<vmem>>, vector<32x1xf32>
    %102 = vector.broadcast %101 : vector<32x1xf32> to vector<32x88xf32>
    %103 = arith.addf %100, %102 : vector<32x88xf32>
    %cst_73 = arith.constant 0.000000e+00 : f32
    %104 = vector.broadcast %cst_73 : f32 to vector<32x88xf32>
    %105 = arith.maximumf %103, %104 : vector<32x88xf32>
    %106 = vector.extract_strided_slice %105 {offsets = [0, 1], sizes = [32, 87], strides = [1, 1]} : vector<32x88xf32> to vector<32x87xf32>
    %107 = vector.extract_strided_slice %105 {offsets = [0, 0], sizes = [32, 1], strides = [1, 1]} : vector<32x88xf32> to vector<32x1xf32>
    %108 = tpu.concatenate %106, %107 in 1 : vector<32x87xf32>, vector<32x1xf32> -> vector<32x88xf32>
    %109 = arith.maximumf %105, %108 : vector<32x88xf32>
    %c0_74 = arith.constant 0 : index
    %c0_75 = arith.constant 0 : index
    %110 = vector.load %arg8[%c0_74, %c0_75] : memref<88x44xf32, #tpu.memory_space<vmem>>, vector<88x44xf32>
    %cst_76 = arith.constant dense<0.000000e+00> : vector<32x44xf32>
    %111 = tpu.matmul %109, %110, %cst_76 {dimension_numbers = #tpu.dot_dimension_numbers<[1], [0], [0], [1], [0, 0, 1, 1], [], []>} : vector<32x88xf32>, vector<88x44xf32>, vector<32x44xf32> -> vector<32x44xf32>
    %112 = vector.extract_strided_slice %111 {offsets = [0, 0], sizes = [1, 44], strides = [1, 1]} : vector<32x44xf32> to vector<1x44xf32>
    %113 = vector.extract_strided_slice %111 {offsets = [1, 0], sizes = [1, 44], strides = [1, 1]} : vector<32x44xf32> to vector<1x44xf32>
    %114 = vector.extract_strided_slice %111 {offsets = [2, 0], sizes = [1, 44], strides = [1, 1]} : vector<32x44xf32> to vector<1x44xf32>
    %115 = vector.extract_strided_slice %111 {offsets = [3, 0], sizes = [1, 44], strides = [1, 1]} : vector<32x44xf32> to vector<1x44xf32>
    %116 = vector.extract_strided_slice %111 {offsets = [4, 0], sizes = [1, 44], strides = [1, 1]} : vector<32x44xf32> to vector<1x44xf32>
    %117 = vector.extract_strided_slice %111 {offsets = [5, 0], sizes = [1, 44], strides = [1, 1]} : vector<32x44xf32> to vector<1x44xf32>
    %118 = vector.extract_strided_slice %111 {offsets = [6, 0], sizes = [1, 44], strides = [1, 1]} : vector<32x44xf32> to vector<1x44xf32>
    %119 = vector.extract_strided_slice %111 {offsets = [7, 0], sizes = [1, 44], strides = [1, 1]} : vector<32x44xf32> to vector<1x44xf32>
    %120 = vector.extract_strided_slice %111 {offsets = [8, 0], sizes = [1, 44], strides = [1, 1]} : vector<32x44xf32> to vector<1x44xf32>
    %121 = vector.extract_strided_slice %111 {offsets = [9, 0], sizes = [1, 44], strides = [1, 1]} : vector<32x44xf32> to vector<1x44xf32>
    %122 = vector.extract_strided_slice %111 {offsets = [10, 0], sizes = [1, 44], strides = [1, 1]} : vector<32x44xf32> to vector<1x44xf32>
    %123 = vector.extract_strided_slice %111 {offsets = [11, 0], sizes = [1, 44], strides = [1, 1]} : vector<32x44xf32> to vector<1x44xf32>
    %124 = vector.extract_strided_slice %111 {offsets = [12, 0], sizes = [1, 44], strides = [1, 1]} : vector<32x44xf32> to vector<1x44xf32>
    %125 = vector.extract_strided_slice %111 {offsets = [13, 0], sizes = [1, 44], strides = [1, 1]} : vector<32x44xf32> to vector<1x44xf32>
    %126 = vector.extract_strided_slice %111 {offsets = [14, 0], sizes = [1, 44], strides = [1, 1]} : vector<32x44xf32> to vector<1x44xf32>
    %127 = vector.extract_strided_slice %111 {offsets = [15, 0], sizes = [1, 44], strides = [1, 1]} : vector<32x44xf32> to vector<1x44xf32>
    %128 = vector.extract_strided_slice %111 {offsets = [16, 0], sizes = [1, 44], strides = [1, 1]} : vector<32x44xf32> to vector<1x44xf32>
    %129 = vector.extract_strided_slice %111 {offsets = [17, 0], sizes = [1, 44], strides = [1, 1]} : vector<32x44xf32> to vector<1x44xf32>
    %130 = vector.extract_strided_slice %111 {offsets = [18, 0], sizes = [1, 44], strides = [1, 1]} : vector<32x44xf32> to vector<1x44xf32>
    %131 = vector.extract_strided_slice %111 {offsets = [19, 0], sizes = [1, 44], strides = [1, 1]} : vector<32x44xf32> to vector<1x44xf32>
    %132 = vector.extract_strided_slice %111 {offsets = [20, 0], sizes = [1, 44], strides = [1, 1]} : vector<32x44xf32> to vector<1x44xf32>
    %133 = vector.extract_strided_slice %111 {offsets = [21, 0], sizes = [1, 44], strides = [1, 1]} : vector<32x44xf32> to vector<1x44xf32>
    %134 = vector.extract_strided_slice %111 {offsets = [22, 0], sizes = [1, 44], strides = [1, 1]} : vector<32x44xf32> to vector<1x44xf32>
    %135 = vector.extract_strided_slice %111 {offsets = [23, 0], sizes = [1, 44], strides = [1, 1]} : vector<32x44xf32> to vector<1x44xf32>
    %136 = vector.extract_strided_slice %111 {offsets = [24, 0], sizes = [1, 44], strides = [1, 1]} : vector<32x44xf32> to vector<1x44xf32>
    %137 = vector.extract_strided_slice %111 {offsets = [25, 0], sizes = [1, 44], strides = [1, 1]} : vector<32x44xf32> to vector<1x44xf32>
    %138 = vector.extract_strided_slice %111 {offsets = [26, 0], sizes = [1, 44], strides = [1, 1]} : vector<32x44xf32> to vector<1x44xf32>
    %139 = vector.extract_strided_slice %111 {offsets = [27, 0], sizes = [1, 44], strides = [1, 1]} : vector<32x44xf32> to vector<1x44xf32>
    %140 = vector.extract_strided_slice %111 {offsets = [28, 0], sizes = [1, 44], strides = [1, 1]} : vector<32x44xf32> to vector<1x44xf32>
    %141 = vector.extract_strided_slice %111 {offsets = [29, 0], sizes = [1, 44], strides = [1, 1]} : vector<32x44xf32> to vector<1x44xf32>
    %142 = vector.extract_strided_slice %111 {offsets = [30, 0], sizes = [1, 44], strides = [1, 1]} : vector<32x44xf32> to vector<1x44xf32>
    %143 = vector.extract_strided_slice %111 {offsets = [31, 0], sizes = [1, 44], strides = [1, 1]} : vector<32x44xf32> to vector<1x44xf32>
    %144 = tpu.concatenate %112, %113, %114, %115, %116, %117, %118, %119, %120, %121, %122, %123, %124, %125, %126, %127 in 1 : vector<1x44xf32>, vector<1x44xf32>, vector<1x44xf32>, vector<1x44xf32>, vector<1x44xf32>, vector<1x44xf32>, vector<1x44xf32>, vector<1x44xf32>, vector<1x44xf32>, vector<1x44xf32>, vector<1x44xf32>, vector<1x44xf32>, vector<1x44xf32>, vector<1x44xf32>, vector<1x44xf32>, vector<1x44xf32> -> vector<1x704xf32>
    %145 = tpu.concatenate %128, %129, %130, %131, %132, %133, %134, %135, %136, %137, %138, %139, %140, %141, %142, %143 in 1 : vector<1x44xf32>, vector<1x44xf32>, vector<1x44xf32>, vector<1x44xf32>, vector<1x44xf32>, vector<1x44xf32>, vector<1x44xf32>, vector<1x44xf32>, vector<1x44xf32>, vector<1x44xf32>, vector<1x44xf32>, vector<1x44xf32>, vector<1x44xf32>, vector<1x44xf32>, vector<1x44xf32>, vector<1x44xf32> -> vector<1x704xf32>
    %146 = tpu.concatenate %144, %145 in 1 : vector<1x704xf32>, vector<1x704xf32> -> vector<1x1408xf32>
    %c0_77 = arith.constant 0 : index
    %c0_78 = arith.constant 0 : index
    %c0_79 = arith.constant 0 : index
    %147 = vector.load %arg2[%c0_77, %c0_78, %c0_79] : memref<1x1x1408xf32, #tpu.memory_space<vmem>>, vector<1x1x1408xf32>
    %148 = vector.shape_cast %147 : vector<1x1x1408xf32> to vector<1x1408xf32>
    %149 = arith.addf %146, %148 : vector<1x1408xf32>
    %c0_80 = arith.constant 0 : index
    %c0_81 = arith.constant 0 : index
    %150 = vector.load %arg9[%c0_80, %c0_81] : memref<1408x64xf32, #tpu.memory_space<vmem>>, vector<1408x64xf32>
    %cst_82 = arith.constant dense<0.000000e+00> : vector<1x64xf32>
    %151 = tpu.matmul %149, %150, %cst_82 {dimension_numbers = #tpu.dot_dimension_numbers<[1], [0], [0], [1], [0, 0, 1, 1], [], []>} : vector<1x1408xf32>, vector<1408x64xf32>, vector<1x64xf32> -> vector<1x64xf32>
    %c0_83 = arith.constant 0 : index
    %c0_84 = arith.constant 0 : index
    %152 = vector.load %arg10[%c0_83, %c0_84] : memref<1x64xf32, #tpu.memory_space<vmem>>, vector<1x64xf32>
    %153 = arith.addf %151, %152 : vector<1x64xf32>
    %cst_85 = arith.constant 0.000000e+00 : f32
    %154 = vector.broadcast %cst_85 : f32 to vector<1x64xf32>
    %155 = arith.maximumf %153, %154 : vector<1x64xf32>
    %c0_86 = arith.constant 0 : index
    %c0_87 = arith.constant 0 : index
    %156 = vector.load %arg11[%c0_86, %c0_87] : memref<64x10xf32, #tpu.memory_space<vmem>>, vector<64x10xf32>
    %cst_88 = arith.constant dense<0.000000e+00> : vector<1x10xf32>
    %157 = tpu.matmul %155, %156, %cst_88 {dimension_numbers = #tpu.dot_dimension_numbers<[1], [0], [0], [1], [0, 0, 1, 1], [], []>} : vector<1x64xf32>, vector<64x10xf32>, vector<1x10xf32> -> vector<1x10xf32>
    %c0_89 = arith.constant 0 : index
    %c0_90 = arith.constant 0 : index
    %158 = vector.load %arg12[%c0_89, %c0_90] : memref<1x10xf32, #tpu.memory_space<vmem>>, vector<1x10xf32>
    %159 = arith.addf %157, %158 : vector<1x10xf32>
    %c0_91 = arith.constant 0 : index
    %c0_92 = arith.constant 0 : index
    %c0_93 = arith.constant 0 : index
    %160 = vector.load %arg13[%c0_91, %c0_92, %c0_93] : memref<1x1x10xf32, #tpu.memory_space<vmem>>, vector<1x1x10xf32>
    %161 = vector.shape_cast %160 : vector<1x1x10xf32> to vector<1x10xf32>
    %162 = vector.shape_cast %159 : vector<1x10xf32> to vector<1x1x10xf32>
    tpu.vector_store %arg13[%c0_91, %c0_92, %c0_93], %162 {strides = array<i32>} : memref<1x1x10xf32, #tpu.memory_space<vmem>>, vector<1x1x10xf32>,
    return
  }
  func.func @transform_0(%arg0: i32) -> (i32, i32, i32) {
    %c0_i32 = arith.constant 0 : i32
    %c0_i32_0 = arith.constant 0 : i32
    %c0_i32_1 = arith.constant 0 : i32
    return %arg0, %c0_i32, %c0_i32_0 : i32, i32, i32
  }
  func.func @transform_1(%arg0: i32) -> (i32, i32, i32) {
    %c0_i32 = arith.constant 0 : i32
    %c0_i32_0 = arith.constant 0 : i32
    %c0_i32_1 = arith.constant 0 : i32
    return %arg0, %c0_i32, %c0_i32_0 : i32, i32, i32
  }
  func.func @transform_2(%arg0: i32) -> (i32, i32, i32) {
    %c0_i32 = arith.constant 0 : i32
    %c0_i32_0 = arith.constant 0 : i32
    %c0_i32_1 = arith.constant 0 : i32
    %c0_i32_2 = arith.constant 0 : i32
    return %c0_i32, %c0_i32_0, %c0_i32_1 : i32, i32, i32
  }
  func.func @transform_3(%arg0: i32) -> (i32, i32) {
    %c0_i32 = arith.constant 0 : i32
    %c0_i32_0 = arith.constant 0 : i32
    %c0_i32_1 = arith.constant 0 : i32
    return %c0_i32, %c0_i32_0 : i32, i32
  }
  func.func @transform_4(%arg0: i32) -> (i32, i32, i32) {
    %c0_i32 = arith.constant 0 : i32
    %c0_i32_0 = arith.constant 0 : i32
    %c0_i32_1 = arith.constant 0 : i32
    %c0_i32_2 = arith.constant 0 : i32
    return %c0_i32, %c0_i32_0, %c0_i32_1 : i32, i32, i32
  }
  func.func @transform_5(%arg0: i32) -> (i32, i32) {
    %c0_i32 = arith.constant 0 : i32
    %c0_i32_0 = arith.constant 0 : i32
    %c0_i32_1 = arith.constant 0 : i32
    return %c0_i32, %c0_i32_0 : i32, i32
  }
  func.func @transform_6(%arg0: i32) -> (i32, i32) {
    %c0_i32 = arith.constant 0 : i32
    %c0_i32_0 = arith.constant 0 : i32
    %c0_i32_1 = arith.constant 0 : i32
    return %c0_i32, %c0_i32_0 : i32, i32
  }
  func.func @transform_7(%arg0: i32) -> (i32, i32) {
    %c0_i32 = arith.constant 0 : i32
    %c0_i32_0 = arith.constant 0 : i32
    %c0_i32_1 = arith.constant 0 : i32
    return %c0_i32, %c0_i32_0 : i32, i32
  }
  func.func @transform_8(%arg0: i32) -> (i32, i32) {
    %c0_i32 = arith.constant 0 : i32
    %c0_i32_0 = arith.constant 0 : i32
    %c0_i32_1 = arith.constant 0 : i32
    return %c0_i32, %c0_i32_0 : i32, i32
  }
  func.func @transform_9(%arg0: i32) -> (i32, i32) {
    %c0_i32 = arith.constant 0 : i32
    %c0_i32_0 = arith.constant 0 : i32
    %c0_i32_1 = arith.constant 0 : i32
    return %c0_i32, %c0_i32_0 : i32, i32
  }
  func.func @transform_10(%arg0: i32) -> (i32, i32) {
    %c0_i32 = arith.constant 0 : i32
    %c0_i32_0 = arith.constant 0 : i32
    %c0_i32_1 = arith.constant 0 : i32
    return %c0_i32, %c0_i32_0 : i32, i32
  }
  func.func @transform_11(%arg0: i32) -> (i32, i32) {
    %c0_i32 = arith.constant 0 : i32
    %c0_i32_0 = arith.constant 0 : i32
    %c0_i32_1 = arith.constant 0 : i32
    return %c0_i32, %c0_i32_0 : i32, i32
  }
  func.func @transform_12(%arg0: i32) -> (i32, i32, i32) {
    %c0_i32 = arith.constant 0 : i32
    %c0_i32_0 = arith.constant 0 : i32
    %c0_i32_1 = arith.constant 0 : i32
    return %arg0, %c0_i32, %c0_i32_0 : i32, i32, i32
  }
}

</mosaic_0001>

<llo_original>
// kernel: pamap_forward.1
$region0: #{pamap_forward.1}
  #allocation0 [shape = 'u32[]', space=smem, size = 0x4, offset = 0x4, fixed_abs, tag = 'smem constant byte address 0x4 - core index']
  #allocation1 [shape = 'u32[72,128]{1,0:T(1,128)}', space=vmem, size = 0x9000, scoped, tag = 'internal scratch']
  %s0 = inlined_call_operand.vmem [shape: f32[2,32,200], index: 0, kind: input, shape index: {}]
  %s1 = inlined_call_operand.vmem [shape: f32[2,1,1408], index: 1, kind: input, shape index: {}]
  %s2 = inlined_call_operand.vmem [shape: f32[9,16,32], index: 2, kind: input, shape index: {}]
  %s3 = inlined_call_operand.vmem [shape: f32[16,1], index: 3, kind: input, shape index: {}]
  %s4 = inlined_call_operand.vmem [shape: f32[9,32,16], index: 4, kind: input, shape index: {}]
  %s5 = inlined_call_operand.vmem [shape: f32[32,1], index: 5, kind: input, shape index: {}]
  %s6 = inlined_call_operand.vmem [shape: f32[192,96], index: 6, kind: input, shape index: {}]
  %s7 = inlined_call_operand.vmem [shape: f32[88,44], index: 7, kind: input, shape index: {}]
  %s8 = inlined_call_operand.vmem [shape: f32[1408,64], index: 8, kind: input, shape index: {}]
  %s9 = inlined_call_operand.vmem [shape: f32[1,64], index: 9, kind: input, shape index: {}]
  %s10 = inlined_call_operand.vmem [shape: f32[64,10], index: 10, kind: input, shape index: {}]
  %s11 = inlined_call_operand.vmem [shape: f32[1,10], index: 11, kind: input, shape index: {}]
  %s12 = inlined_call_operand.hbm [shape: f32[2,1,10], index: 12, kind: output, shape index: {}]
  %s13 = sld [smem:[#allocation0]]
  $region81: #{pamap_forward.1} parent=0
    _
  %s15 = ssub.s32 1, %s13
  %s16 = scalar_select 0, %s15, %s13
  $region1: #{pamap_forward.1} parent=0
    #allocation2 [shape = 'u8[1024]{0}', space=vmem, size = 0x400, scoped, tag = 'output window, operand 0']
    #allocation3 [shape = 's32[2]{0}', space=sflag, size = 0x8, scoped, tag = 'scoped memory for pamap_forward.1']
    %17 = vsyncpa [#allocation3], 0
    %s18 = scalar_lea.sflag [#allocation3], 1
    %19 = vsyncpa %s18, 0
    loop: start=0, step=1, limit=4
    $region2: #{pamap_forward.1} parent=1 // loop_pre_header
      _
    $region3: #{pamap_forward.1} parent=1 // loop_header
      %s21 = sphi 0, %s25
      %p22 = scmp.ge.s32.totalorder %s21, 4
      %s31 = sphi 0, %s33
      %s34 = sphi 0, %s31
      %s35 = sphi 0, %s34
      %s51 = sphi 0, %s35
      %s57 = sphi 0, %s59
      %s60 = sphi 0, %s57
      %s61 = sphi 0, %s60
      %s77 = sphi 0, %s61
      %s81 = sphi 0, %s81
      %s83 = sphi 0, %s81
      %s84 = sphi 0, %s83
      %s98 = sphi 0, %s84
      %s102 = sphi 0, %s102
      %s104 = sphi 0, %s102
      %s105 = sphi 0, %s104
      %s119 = sphi 0, %s105
      %s123 = sphi 0, %s123
      %s125 = sphi 0, %s123
      %s126 = sphi 0, %s125
      %s140 = sphi 0, %s126
      %s144 = sphi 0, %s144
      %s146 = sphi 0, %s144
      %s147 = sphi 0, %s146
      %s161 = sphi 0, %s147
      %s165 = sphi 0, %s165
      %s167 = sphi 0, %s165
      %s168 = sphi 0, %s167
      %s182 = sphi 0, %s168
      %s186 = sphi 0, %s186
      %s188 = sphi 0, %s186
      %s189 = sphi 0, %s188
      %s203 = sphi 0, %s189
      %s207 = sphi 0, %s207
      %s209 = sphi 0, %s207
      %s210 = sphi 0, %s209
      %s224 = sphi 0, %s210
      %s228 = sphi 0, %s228
      %s230 = sphi 0, %s228
      %s231 = sphi 0, %s230
      %s245 = sphi 0, %s231
      %s249 = sphi 0, %s249
      %s251 = sphi 0, %s249
      %s252 = sphi 0, %s251
      %s266 = sphi 0, %s252
      %s270 = sphi 0, %s270
      %s272 = sphi 0, %s270
      %s273 = sphi 0, %s272
      %s287 = sphi 0, %s273
      %s293 = sphi 0, %s295
      %s296 = sphi 0, %s293
      %s297 = sphi 0, %s296
      %s313 = sphi 0, %s297
    $region4: #{pamap_forward.1} parent=1 // loop_header_branch
      %24 = sbr.rel (%p22) target = $region8
    $region5: #{pamap_forward.1} parent=1 // loop_body
      %s26 = ssub.s32 %s21, 1
      %s27 = ssub.s32 %s21, 2
      %s28 = sadd.s32 %s21, 1
      %s29 = ssub.s32 %s21, %s28
      %p30 = scmp.eq.s32.totalorder %s29, 0
      %s32 = sadd.s32 %s31, 1
      %s33 = scalar_select %p30, %s31, %s32
      %p36 = pneg %p30
      %p37 = scmp.eq.s32.totalorder %s21, 1
      %p38 = por %p36, %p37
      %p39 = scmp.ne.s32.totalorder %s31, %s34
      %p40 = scmp.eq.s32.totalorder %s21, 0
      %p41 = por %p39, %p40
      %p42 = scmp.ne.s32.totalorder %s31, %s34
      %p43 = scmp.eq.s32.totalorder %s26, 1
      %p44 = por %p42, %p43
      %p45 = scmp.ne.s32.totalorder %s34, %s35
      %p46 = scmp.eq.s32.totalorder %s26, 0
      %p47 = por %p45, %p46
      %p48 = scmp.ne.s32.totalorder %s34, %s35
      %p49 = scmp.eq.s32.totalorder %s27, 1
      %p50 = por %p48, %p49
      %p52 = scmp.ne.s32.totalorder %s35, %s51
      %p53 = scmp.eq.s32.totalorder %s27, 0
      %p54 = por %p52, %p53
      %s55 = ssub.s32 %s21, %s28
      %p56 = scmp.eq.s32.totalorder %s55, 0
      %s58 = sadd.s32 %s57, 1
      %s59 = scalar_select %p56, %s57, %s58
      %p62 = pneg %p56
      %p63 = scmp.eq.s32.totalorder %s21, 1
      %p64 = por %p62, %p63
      %p65 = scmp.ne.s32.totalorder %s57, %s60
      %p66 = scmp.eq.s32.totalorder %s21, 0
      %p67 = por %p65, %p66
      %p68 = scmp.ne.s32.totalorder %s57, %s60
      %p69 = scmp.eq.s32.totalorder %s26, 1
      %p70 = por %p68, %p69
      %p71 = scmp.ne.s32.totalorder %s60, %s61
      %p72 = scmp.eq.s32.totalorder %s26, 0
      %p73 = por %p71, %p72
      %p74 = scmp.ne.s32.totalorder %s60, %s61
      %p75 = scmp.eq.s32.totalorder %s27, 1
      %p76 = por %p74, %p75
      %p78 = scmp.ne.s32.totalorder %s61, %s77
      %p79 = scmp.eq.s32.totalorder %s27, 0
      %p80 = por %p78, %p79
      %s82 = sadd.s32 %s81, 1
      %p85 = scmp.eq.s32.totalorder %s21, 1
      %p86 = scmp.ne.s32.totalorder %s81, %s83
      %p87 = scmp.eq.s32.totalorder %s21, 0
      %p88 = por %p86, %p87
      %p89 = scmp.ne.s32.totalorder %s81, %s83
      %p90 = scmp.eq.s32.totalorder %s26, 1
      %p91 = por %p89, %p90
      %p92 = scmp.ne.s32.totalorder %s83, %s84
      %p93 = scmp.eq.s32.totalorder %s26, 0
      %p94 = por %p92, %p93
      %p95 = scmp.ne.s32.totalorder %s83, %s84
      %p96 = scmp.eq.s32.totalorder %s27, 1
      %p97 = por %p95, %p96
      %p99 = scmp.ne.s32.totalorder %s84, %s98
      %p100 = scmp.eq.s32.totalorder %s27, 0
      %p101 = por %p99, %p100
      %s103 = sadd.s32 %s102, 1
      %p106 = scmp.eq.s32.totalorder %s21, 1
      %p107 = scmp.ne.s32.totalorder %s102, %s104
      %p108 = scmp.eq.s32.totalorder %s21, 0
      %p109 = por %p107, %p108
      %p110 = scmp.ne.s32.totalorder %s102, %s104
      %p111 = scmp.eq.s32.totalorder %s26, 1
      %p112 = por %p110, %p111
      %p113 = scmp.ne.s32.totalorder %s104, %s105
      %p114 = scmp.eq.s32.totalorder %s26, 0
      %p115 = por %p113, %p114
      %p116 = scmp.ne.s32.totalorder %s104, %s105
      %p117 = scmp.eq.s32.totalorder %s27, 1
      %p118 = por %p116, %p117
      %p120 = scmp.ne.s32.totalorder %s105, %s119
      %p121 = scmp.eq.s32.totalorder %s27, 0
      %p122 = por %p120, %p121
      %s124 = sadd.s32 %s123, 1
      %p127 = scmp.eq.s32.totalorder %s21, 1
      %p128 = scmp.ne.s32.totalorder %s123, %s125
      %p129 = scmp.eq.s32.totalorder %s21, 0
      %p130 = por %p128, %p129
      %p131 = scmp.ne.s32.totalorder %s123, %s125
      %p132 = scmp.eq.s32.totalorder %s26, 1
      %p133 = por %p131, %p132
      %p134 = scmp.ne.s32.totalorder %s125, %s126
      %p135 = scmp.eq.s32.totalorder %s26, 0
      %p136 = por %p134, %p135
      %p137 = scmp.ne.s32.totalorder %s125, %s126
      %p138 = scmp.eq.s32.totalorder %s27, 1
      %p139 = por %p137, %p138
      %p141 = scmp.ne.s32.totalorder %s126, %s140
      %p142 = scmp.eq.s32.totalorder %s27, 0
      %p143 = por %p141, %p142
      %s145 = sadd.s32 %s144, 1
      %p148 = scmp.eq.s32.totalorder %s21, 1
      %p149 = scmp.ne.s32.totalorder %s144, %s146
      %p150 = scmp.eq.s32.totalorder %s21, 0
      %p151 = por %p149, %p150
      %p152 = scmp.ne.s32.totalorder %s144, %s146
      %p153 = scmp.eq.s32.totalorder %s26, 1
      %p154 = por %p152, %p153
      %p155 = scmp.ne.s32.totalorder %s146, %s147
      %p156 = scmp.eq.s32.totalorder %s26, 0
      %p157 = por %p155, %p156
      %p158 = scmp.ne.s32.totalorder %s146, %s147
      %p159 = scmp.eq.s32.totalorder %s27, 1
      %p160 = por %p158, %p159
      %p162 = scmp.ne.s32.totalorder %s147, %s161
      %p163 = scmp.eq.s32.totalorder %s27, 0
      %p164 = por %p162, %p163
      %s166 = sadd.s32 %s165, 1
      %p169 = scmp.eq.s32.totalorder %s21, 1
      %p170 = scmp.ne.s32.totalorder %s165, %s167
      %p171 = scmp.eq.s32.totalorder %s21, 0
      %p172 = por %p170, %p171
      %p173 = scmp.ne.s32.totalorder %s165, %s167
      %p174 = scmp.eq.s32.totalorder %s26, 1
      %p175 = por %p173, %p174
      %p176 = scmp.ne.s32.totalorder %s167, %s168
      %p177 = scmp.eq.s32.totalorder %s26, 0
      %p178 = por %p176, %p177
      %p179 = scmp.ne.s32.totalorder %s167, %s168
      %p180 = scmp.eq.s32.totalorder %s27, 1
      %p181 = por %p179, %p180
      %p183 = scmp.ne.s32.totalorder %s168, %s182
      %p184 = scmp.eq.s32.totalorder %s27, 0
      %p185 = por %p183, %p184
      %s187 = sadd.s32 %s186, 1
      %p190 = scmp.eq.s32.totalorder %s21, 1
      %p191 = scmp.ne.s32.totalorder %s186, %s188
      %p192 = scmp.eq.s32.totalorder %s21, 0
      %p193 = por %p191, %p192
      %p194 = scmp.ne.s32.totalorder %s186, %s188
      %p195 = scmp.eq.s32.totalorder %s26, 1
      %p196 = por %p194, %p195
      %p197 = scmp.ne.s32.totalorder %s188, %s189
      %p198 = scmp.eq.s32.totalorder %s26, 0
      %p199 = por %p197, %p198
      %p200 = scmp.ne.s32.totalorder %s188, %s189
      %p201 = scmp.eq.s32.totalorder %s27, 1
      %p202 = por %p200, %p201
      %p204 = scmp.ne.s32.totalorder %s189, %s203
      %p205 = scmp.eq.s32.totalorder %s27, 0
      %p206 = por %p204, %p205
      %s208 = sadd.s32 %s207, 1
      %p211 = scmp.eq.s32.totalorder %s21, 1
      %p212 = scmp.ne.s32.totalorder %s207, %s209
      %p213 = scmp.eq.s32.totalorder %s21, 0
      %p214 = por %p212, %p213
      %p215 = scmp.ne.s32.totalorder %s207, %s209
      %p216 = scmp.eq.s32.totalorder %s26, 1
      %p217 = por %p215, %p216
      %p218 = scmp.ne.s32.totalorder %s209, %s210
      %p219 = scmp.eq.s32.totalorder %s26, 0
      %p220 = por %p218, %p219
      %p221 = scmp.ne.s32.totalorder %s209, %s210
      %p222 = scmp.eq.s32.totalorder %s27, 1
      %p223 = por %p221, %p222
      %p225 = scmp.ne.s32.totalorder %s210, %s224
      %p226 = scmp.eq.s32.totalorder %s27, 0
      %p227 = por %p225, %p226
      %s229 = sadd.s32 %s228, 1
      %p232 = scmp.eq.s32.totalorder %s21, 1
      %p233 = scmp.ne.s32.totalorder %s228, %s230
      %p234 = scmp.eq.s32.totalorder %s21, 0
      %p235 = por %p233, %p234
      %p236 = scmp.ne.s32.totalorder %s228, %s230
      %p237 = scmp.eq.s32.totalorder %s26, 1
      %p238 = por %p236, %p237
      %p239 = scmp.ne.s32.totalorder %s230, %s231
      %p240 = scmp.eq.s32.totalorder %s26, 0
      %p241 = por %p239, %p240
      %p242 = scmp.ne.s32.totalorder %s230, %s231
      %p243 = scmp.eq.s32.totalorder %s27, 1
      %p244 = por %p242, %p243
      %p246 = scmp.ne.s32.totalorder %s231, %s245
      %p247 = scmp.eq.s32.totalorder %s27, 0
      %p248 = por %p246, %p247
      %s250 = sadd.s32 %s249, 1
      %p253 = scmp.eq.s32.totalorder %s21, 1
      %p254 = scmp.ne.s32.totalorder %s249, %s251
      %p255 = scmp.eq.s32.totalorder %s21, 0
      %p256 = por %p254, %p255
      %p257 = scmp.ne.s32.totalorder %s249, %s251
      %p258 = scmp.eq.s32.totalorder %s26, 1
      %p259 = por %p257, %p258
      %p260 = scmp.ne.s32.totalorder %s251, %s252
      %p261 = scmp.eq.s32.totalorder %s26, 0
      %p262 = por %p260, %p261
      %p263 = scmp.ne.s32.totalorder %s251, %s252
      %p264 = scmp.eq.s32.totalorder %s27, 1
      %p265 = por %p263, %p264
      %p267 = scmp.ne.s32.totalorder %s252, %s266
      %p268 = scmp.eq.s32.totalorder %s27, 0
      %p269 = por %p267, %p268
      %s271 = sadd.s32 %s270, 1
      %p274 = scmp.eq.s32.totalorder %s21, 1
      %p275 = scmp.ne.s32.totalorder %s270, %s272
      %p276 = scmp.eq.s32.totalorder %s21, 0
      %p277 = por %p275, %p276
      %p278 = scmp.ne.s32.totalorder %s270, %s272
      %p279 = scmp.eq.s32.totalorder %s26, 1
      %p280 = por %p278, %p279
      %p281 = scmp.ne.s32.totalorder %s272, %s273
      %p282 = scmp.eq.s32.totalorder %s26, 0
      %p283 = por %p281, %p282
      %p284 = scmp.ne.s32.totalorder %s272, %s273
      %p285 = scmp.eq.s32.totalorder %s27, 1
      %p286 = por %p284, %p285
      %p288 = scmp.ne.s32.totalorder %s273, %s287
      %p289 = scmp.eq.s32.totalorder %s27, 0
      %p290 = por %p288, %p289
      %s291 = ssub.s32 %s21, %s28
      %p292 = scmp.eq.s32.totalorder %s291, 0
      %s294 = sadd.s32 %s293, 1
      %s295 = scalar_select %p292, %s293, %s294
      %p298 = pneg %p292
      %p299 = scmp.eq.s32.totalorder %s21, 1
      %p300 = por %p298, %p299
      %p301 = scmp.ne.s32.totalorder %s293, %s296
      %p302 = scmp.eq.s32.totalorder %s21, 0
      %p303 = por %p301, %p302
      %p304 = scmp.ne.s32.totalorder %s293, %s296
      %p305 = scmp.eq.s32.totalorder %s26, 1
      %p306 = por %p304, %p305
      %p307 = scmp.ne.s32.totalorder %s296, %s297
      %p308 = scmp.eq.s32.totalorder %s26, 0
      %p309 = por %p307, %p308
      %p310 = scmp.ne.s32.totalorder %s296, %s297
      %p311 = scmp.eq.s32.totalorder %s27, 1
      %p312 = por %p310, %p311
      %p314 = scmp.ne.s32.totalorder %s297, %s313
      %p315 = scmp.eq.s32.totalorder %s27, 0
      %p316 = por %p314, %p315
      %p317 = scmp.le.s32.totalorder 1, %s21
      %p318 = scmp.lt.s32.totalorder %s21, 3
      %p319 = pnand %p317, %p318
      %p320 = pneg %p319
      // Predicated region
      $region9: #{pamap_forward.1} parent=5 // pred_check
        _
      $region10: #{pamap_forward.1} parent=5 // pred_check_branch
        %322 = sbr.rel (%p319) target = $region12
      $region11: #{pamap_forward.1} parent=5 // pred_region
        %s323 = ssub.s32 %s21, 1
        // Predicated region
        $region13: #{pamap_forward.1} parent=11 // pred_check
          %p324 = pneg %p94
        $region14: #{pamap_forward.1} parent=11 // pred_check_branch
          %326 = sbr.rel (%p324) target = $region16
        $region15: #{pamap_forward.1} parent=11 // pred_region
          _
        $region16: #{pamap_forward.1} parent=11 // pred_fallthru
          _
        // Predicated region
        $region17: #{pamap_forward.1} parent=11 // pred_check
          %p327 = pneg %p115
        $region18: #{pamap_forward.1} parent=11 // pred_check_branch
          %329 = sbr.rel (%p327) target = $region20
        $region19: #{pamap_forward.1} parent=11 // pred_region
          _
        $region20: #{pamap_forward.1} parent=11 // pred_fallthru
          _
        // Predicated region
        $region21: #{pamap_forward.1} parent=11 // pred_check
          %p330 = pneg %p136
        $region22: #{pamap_forward.1} parent=11 // pred_check_branch
          %332 = sbr.rel (%p330) target = $region24
        $region23: #{pamap_forward.1} parent=11 // pred_region
          _
        $region24: #{pamap_forward.1} parent=11 // pred_fallthru
          _
        // Predicated region
        $region25: #{pamap_forward.1} parent=11 // pred_check
          %p333 = pneg %p157
        $region26: #{pamap_forward.1} parent=11 // pred_check_branch
          %335 = sbr.rel (%p333) target = $region28
        $region27: #{pamap_forward.1} parent=11 // pred_region
          _
        $region28: #{pamap_forward.1} parent=11 // pred_fallthru
          _
        // Predicated region
        $region29: #{pamap_forward.1} parent=11 // pred_check
          %p336 = pneg %p178
        $region30: #{pamap_forward.1} parent=11 // pred_check_branch
          %338 = sbr.rel (%p336) target = $region32
        $region31: #{pamap_forward.1} parent=11 // pred_region
          _
        $region32: #{pamap_forward.1} parent=11 // pred_fallthru
          _
        // Predicated region
        $region33: #{pamap_forward.1} parent=11 // pred_check
          %p339 = pneg %p199
        $region34: #{pamap_forward.1} parent=11 // pred_check_branch
          %341 = sbr.rel (%p339) target = $region36
        $region35: #{pamap_forward.1} parent=11 // pred_region
          _
        $region36: #{pamap_forward.1} parent=11 // pred_fallthru
          _
        // Predicated region
        $region37: #{pamap_forward.1} parent=11 // pred_check
          %p342 = pneg %p220
        $region38: #{pamap_forward.1} parent=11 // pred_check_branch
          %344 = sbr.rel (%p342) target = $region40
        $region39: #{pamap_forward.1} parent=11 // pred_region
          _
        $region40: #{pamap_forward.1} parent=11 // pred_fallthru
          _
        // Predicated region
        $region41: #{pamap_forward.1} parent=11 // pred_check
          %p345 = pneg %p241
        $region42: #{pamap_forward.1} parent=11 // pred_check_branch
          %347 = sbr.rel (%p345) target = $region44
        $region43: #{pamap_forward.1} parent=11 // pred_region
          _
        $region44: #{pamap_forward.1} parent=11 // pred_fallthru
          _
        // Predicated region
        $region45: #{pamap_forward.1} parent=11 // pred_check
          %p348 = pneg %p262
        $region46: #{pamap_forward.1} parent=11 // pred_check_branch
          %350 = sbr.rel (%p348) target = $region48
        $region47: #{pamap_forward.1} parent=11 // pred_region
          _
        $region48: #{pamap_forward.1} parent=11 // pred_fallthru
          _
        // Predicated region
        $region49: #{pamap_forward.1} parent=11 // pred_check
          %p351 = pneg %p283
        $region50: #{pamap_forward.1} parent=11 // pred_check_branch
          %353 = sbr.rel (%p351) target = $region52
        $region51: #{pamap_forward.1} parent=11 // pred_region
          _
        $region52: #{pamap_forward.1} parent=11 // pred_fallthru
          _
      $region12: #{pamap_forward.1} parent=5 // pred_fallthru
        _
      %p354 = scmp.lt.s32.totalorder %s21, 2
      // Predicated region
      $region53: #{pamap_forward.1} parent=5 // pred_check
        %p355 = pneg %p354
      $region54: #{pamap_forward.1} parent=5 // pred_check_branch
        %357 = sbr.rel (%p355) target = $region56
      $region55: #{pamap_forward.1} parent=5 // pred_region
        // Predicated region
        $region57: #{pamap_forward.1} parent=55 // pred_check
          %p358 = pneg %p41
        $region58: #{pamap_forward.1} parent=55 // pred_check_branch
          %360 = sbr.rel (%p358) target = $region60
        $region59: #{pamap_forward.1} parent=55 // pred_region
          %p361 = scmp.lt.s32.totalorder %s21, 1
          %s362 = scalar_select %p361, %s21, 1
          %s363 = smul.addr %s362, 8
          %s364 = smul.addr %s363, 8
          %s365 = scalar_lea.vmem %s0, %s364
        $region60: #{pamap_forward.1} parent=55 // pred_fallthru
          _
        // Predicated region
        $region61: #{pamap_forward.1} parent=55 // pred_check
          %p366 = pneg %p67
        $region62: #{pamap_forward.1} parent=55 // pred_check_branch
          %368 = sbr.rel (%p366) target = $region64
        $region63: #{pamap_forward.1} parent=55 // pred_region
          %p369 = scmp.lt.s32.totalorder %s21, 1
          %s370 = scalar_select %p369, %s21, 1
          %s371 = smul.addr %s370, 11
          %s372 = scalar_lea.vmem %s1, %s371
        $region64: #{pamap_forward.1} parent=55 // pred_fallthru
          _
      $region56: #{pamap_forward.1} parent=5 // pred_fallthru
        _
      %p373 = scmp.le.s32.totalorder 1, %s21
      %p374 = scmp.lt.s32.totalorder %s21, 3
      %p375 = pnand %p373, %p374
      %p376 = pneg %p375
      // Predicated region
      $region65: #{pamap_forward.1} parent=5 // pred_check
        _
      $region66: #{pamap_forward.1} parent=5 // pred_check_branch
        %378 = sbr.rel (%p375) target = $region68
      $region67: #{pamap_forward.1} parent=5 // pred_region
        %s379 = ssub.s32 %s21, 1
        %p380 = scmp.lt.s32.totalorder %s26, 1
        %s381 = scalar_select %p380, %s26, 1
        %s382 = smul.addr %s381, 8
        %s383 = smul.addr %s382, 8
        %s384 = scalar_lea.vmem %s0, %s383
        %p385 = pneg %p47
        %p386 = pneg %p44
        %p387 = scmp.lt.s32.totalorder %s26, 1
        %s388 = scalar_select %p387, %s26, 1
        %s389 = smul.addr %s388, 11
        %s390 = scalar_lea.vmem %s1, %s389
        %p391 = pneg %p73
        %p392 = pneg %p70
        %p393 = pneg %p94
        %p394 = pneg %p91
        %p395 = pneg %p115
        %p396 = pneg %p112
        %p397 = pneg %p136
        %p398 = pneg %p133
        %p399 = pneg %p157
        %p400 = pneg %p154
        %p401 = pneg %p178
        %p402 = pneg %p175
        %p403 = pneg %p199
        %p404 = pneg %p196
        %p405 = pneg %p220
        %p406 = pneg %p217
        %p407 = pneg %p241
        %p408 = pneg %p238
        %p409 = pneg %p262
        %p410 = pneg %p259
        %p411 = pneg %p283
        %p412 = pneg %p280
        %p413 = pneg %p309
        %p414 = pneg %p306
        %s415 = sand.u32 %s296, 1
        %s416 = scalar_lea.sflag [#allocation3], %s415
        %s417 = sand.u32 %s296, 1
        %s418 = scalar_lea.vmem [#allocation2], %s417
        %p419 = scmp.lt.s32.totalorder %s26, 1
        %s420 = scalar_select %p419, %s26, 1
        %s421 = smul.addr %s420, 8
        %s422 = smul.addr %s421, 8
        %s423 = scalar_lea.vmem %s0, %s422
        %p424 = scmp.lt.s32.totalorder %s26, 1
        %s425 = scalar_select %p424, %s26, 1
        %s426 = smul.addr %s425, 11
        %s427 = scalar_lea.vmem %s1, %s426
        %v428 = vld [vmem:[%s423] sm:$0xff]
        %v429 = vld [vmem:[%s423 + $0x8] sm:$0xff]
        %v430 = vld [vmem:[%s423 + $0x10] sm:$0xff]
        %v431 = vld [vmem:[%s423 + $0x18] sm:$0xff]
        %v432 = vld [vmem:[%s423 + $0x20] sm:$0xff]
        %v433 = vld [vmem:[%s423 + $0x28] sm:$0xff]
        %v434 = vld [vmem:[%s423 + $0x30] sm:$0xff]
        %v435 = vld [vmem:[%s423 + $0x38] sm:$0xff]
        %v436 = vld [vmem:[%s2] sm:$0xff]
        %v437 = vld [vmem:[%s2 + $0x8] sm:$0xff]
        %s438 = scalar_lea.vmem %s2, 16
        %v439 = vld [vmem:[%s438] sm:$0xff]
        %v440 = vld [vmem:[%s438 + $0x8] sm:$0xff]
        %449 = vrot.lane.b32.xlu0 %v428, 127
        %v450 = vpop.permute.xlu0 %449
        %451 = vrot.lane.b32.xlu0 %v429, 127
        %v452 = vpop.permute.xlu0 %451
        %453 = vrot.lane.b32.xlu0 %v430, 127
        %v454 = vpop.permute.xlu0 %453
        %455 = vrot.lane.b32.xlu0 %v431, 127
        %v456 = vpop.permute.xlu0 %455
        %457 = vrot.lane.b32.xlu0 %v432, 127
        %v458 = vpop.permute.xlu0 %457
        %459 = vrot.lane.b32.xlu0 %v433, 127
        %v460 = vpop.permute.xlu0 %459
        %461 = vrot.lane.b32.xlu0 %v434, 127
        %v462 = vpop.permute.xlu0 %461
        %463 = vrot.lane.b32.xlu0 %v435, 127
        %v464 = vpop.permute.xlu0 %463
        %vm465 = vcmask 1039360
        %v466 = vsel %vm465, %v450, %v452
        %v467 = vsel %vm465, %v454, %v456
        %v468 = vsel %vm465, %v458, %v460
        %v469 = vsel %vm465, %v462, %v464
        %vm478 = vcmask 261120
        %v480 = vsel %vm478, %v439, 0
        %v483 = vsel %vm478, %v440, 0
        %485 = vmatpush.msra.mxu0 0.0
        %486 = vmatpush.msra.mxu0 0.0
        %487 = vmatpush.msra.mxu0 0.0
        %488 = vmatpush.msra.mxu0 0.0
        %489 = vmatpush.msra.mxu0 0.0
        %490 = vmatpush.msra.mxu0 0.0
        %491 = vmatpush.msra.mxu0 0.0
        %492 = vmatpush.msra.mxu0 0.0
        %493 = vmatpush.msra.mxu0 0.0
        %494 = vmatpush.msra.mxu0 0.0
        %495 = vmatpush.msra.mxu0 0.0
        %496 = vmatpush.msra.mxu0 0.0
        %497 = vmatpush.msra.mxu0 %v469
        %498 = vmatpush.msra.mxu0 %v468
        %499 = vmatpush.msra.mxu0 %v467
        %500 = vmatpush.msra.mxu0 %v466
        %501 = vmatmul.f32.gmra.mxu0 %v480
        %v502 = vpop.f32.mrf.mxu0
        %v503 = vadd.f32 0.0, %v502
        %504 = vmatmul.f32.gmra.mxu0 %v483
        %v505 = vpop.f32.mrf.mxu0
        %v506 = vadd.f32 0.0, %v505
        %507 = vdwg.mxu0
        %508 = vmatpush.msra.mxu0 0.0
        %509 = vmatpush.msra.mxu0 0.0
        %510 = vmatpush.msra.mxu0 0.0
        %511 = vmatpush.msra.mxu0 0.0
        %512 = vmatpush.msra.mxu0 0.0
        %513 = vmatpush.msra.mxu0 0.0
        %514 = vmatpush.msra.mxu0 0.0
        %515 = vmatpush.msra.mxu0 0.0
        %516 = vmatpush.msra.mxu0 0.0
        %517 = vmatpush.msra.mxu0 0.0
        %518 = vmatpush.msra.mxu0 0.0
        %519 = vmatpush.msra.mxu0 0.0
        %520 = vmatpush.msra.mxu0 %v464
        %521 = vmatpush.msra.mxu0 %v460
        %522 = vmatpush.msra.mxu0 %v456
        %523 = vmatpush.msra.mxu0 %v452
        %524 = vmatmul.f32.gmra.mxu0 %v480
        %v525 = vpop.f32.mrf.mxu0
        %v526 = vadd.f32 0.0, %v525
        %527 = vmatmul.f32.gmra.mxu0 %v483
        %v528 = vpop.f32.mrf.mxu0
        %v529 = vadd.f32 0.0, %v528
        %530 = vdwg.mxu0
        %v532 = vsel %vm478, %v436, 0
        %v535 = vsel %vm478, %v437, 0
        %537 = vmatpush.msra.mxu0 0.0
        %538 = vmatpush.msra.mxu0 0.0
        %539 = vmatpush.msra.mxu0 0.0
        %540 = vmatpush.msra.mxu0 0.0
        %541 = vmatpush.msra.mxu0 0.0
        %542 = vmatpush.msra.mxu0 0.0
        %543 = vmatpush.msra.mxu0 0.0
        %544 = vmatpush.msra.mxu0 0.0
        %545 = vmatpush.msra.mxu0 0.0
        %546 = vmatpush.msra.mxu0 0.0
        %547 = vmatpush.msra.mxu0 0.0
        %548 = vmatpush.msra.mxu0 0.0
        %549 = vmatpush.msra.mxu0 %v434
        %550 = vmatpush.msra.mxu0 %v432
        %551 = vmatpush.msra.mxu0 %v430
        %552 = vmatpush.msra.mxu0 %v428
        %553 = vmatmul.f32.gmra.mxu0 %v532
        %v554 = vpop.f32.mrf.mxu0
        %v555 = vadd.f32 %v503, %v554
        %556 = vmatmul.f32.gmra.mxu0 %v535
        %v557 = vpop.f32.mrf.mxu0
        %v558 = vadd.f32 %v506, %v557
        %559 = vdwg.mxu0
        %560 = vmatpush.msra.mxu0 0.0
        %561 = vmatpush.msra.mxu0 0.0
        %562 = vmatpush.msra.mxu0 0.0
        %563 = vmatpush.msra.mxu0 0.0
        %564 = vmatpush.msra.mxu0 0.0
        %565 = vmatpush.msra.mxu0 0.0
        %566 = vmatpush.msra.mxu0 0.0
        %567 = vmatpush.msra.mxu0 0.0
        %568 = vmatpush.msra.mxu0 0.0
        %569 = vmatpush.msra.mxu0 0.0
        %570 = vmatpush.msra.mxu0 0.0
        %571 = vmatpush.msra.mxu0 0.0
        %572 = vmatpush.msra.mxu0 %v435
        %573 = vmatpush.msra.mxu0 %v433
        %574 = vmatpush.msra.mxu0 %v431
        %575 = vmatpush.msra.mxu0 %v429
        %576 = vmatmul.f32.gmra.mxu0 %v532
        %v577 = vpop.f32.mrf.mxu0
        %v578 = vadd.f32 %v526, %v577
        %579 = vmatmul.f32.gmra.mxu0 %v535
        %v580 = vpop.f32.mrf.mxu0
        %v581 = vadd.f32 %v529, %v580
        %582 = vdwg.mxu0
        %s583 = scalar_lea.vmem %s2, 32
        %v584 = vld [vmem:[%s583] sm:$0xff]
        %v585 = vld [vmem:[%s583 + $0x8] sm:$0xff]
        %586 = vrot.lane.b32.xlu0 %v428, 126
        %v587 = vpop.permute.xlu0 %586
        %588 = vrot.lane.b32.xlu0 %v429, 126
        %v589 = vpop.permute.xlu0 %588
        %590 = vrot.lane.b32.xlu0 %v430, 126
        %v591 = vpop.permute.xlu0 %590
        %592 = vrot.lane.b32.xlu0 %v431, 126
        %v593 = vpop.permute.xlu0 %592
        %594 = vrot.lane.b32.xlu0 %v432, 126
        %v595 = vpop.permute.xlu0 %594
        %596 = vrot.lane.b32.xlu0 %v433, 126
        %v597 = vpop.permute.xlu0 %596
        %598 = vrot.lane.b32.xlu0 %v434, 126
        %v599 = vpop.permute.xlu0 %598
        %600 = vrot.lane.b32.xlu0 %v435, 126
        %v601 = vpop.permute.xlu0 %600
        %vm602 = vcmask 1031168
        %v603 = vsel %vm602, %v587, %v589
        %v604 = vsel %vm602, %v591, %v593
        %v605 = vsel %vm602, %v595, %v597
        %v606 = vsel %vm602, %v599, %v601
        %v616 = vsel %vm478, %v584, 0
        %v619 = vsel %vm478, %v585, 0
        %621 = vmatpush.msra.mxu0 0.0
        %622 = vmatpush.msra.mxu0 0.0
        %623 = vmatpush.msra.mxu0 0.0
        %624 = vmatpush.msra.mxu0 0.0
        %625 = vmatpush.msra.mxu0 0.0
        %626 = vmatpush.msra.mxu0 0.0
        %627 = vmatpush.msra.mxu0 0.0
        %628 = vmatpush.msra.mxu0 0.0
        %629 = vmatpush.msra.mxu0 0.0
        %630 = vmatpush.msra.mxu0 0.0
        %631 = vmatpush.msra.mxu0 0.0
        %632 = vmatpush.msra.mxu0 0.0
        %633 = vmatpush.msra.mxu0 %v606
        %634 = vmatpush.msra.mxu0 %v605
        %635 = vmatpush.msra.mxu0 %v604
        %636 = vmatpush.msra.mxu0 %v603
        %637 = vmatmul.f32.gmra.mxu0 %v616
        %v638 = vpop.f32.mrf.mxu0
        %v639 = vadd.f32 0.0, %v638
        %640 = vmatmul.f32.gmra.mxu0 %v619
        %v641 = vpop.f32.mrf.mxu0
        %v642 = vadd.f32 0.0, %v641
        %643 = vdwg.mxu0
        %644 = vmatpush.msra.mxu0 0.0
        %645 = vmatpush.msra.mxu0 0.0
        %646 = vmatpush.msra.mxu0 0.0
        %647 = vmatpush.msra.mxu0 0.0
        %648 = vmatpush.msra.mxu0 0.0
        %649 = vmatpush.msra.mxu0 0.0
        %650 = vmatpush.msra.mxu0 0.0
        %651 = vmatpush.msra.mxu0 0.0
        %652 = vmatpush.msra.mxu0 0.0
        %653 = vmatpush.msra.mxu0 0.0
        %654 = vmatpush.msra.mxu0 0.0
        %655 = vmatpush.msra.mxu0 0.0
        %656 = vmatpush.msra.mxu0 %v601
        %657 = vmatpush.msra.mxu0 %v597
        %658 = vmatpush.msra.mxu0 %v593
        %659 = vmatpush.msra.mxu0 %v589
        %660 = vmatmul.f32.gmra.mxu0 %v616
        %v661 = vpop.f32.mrf.mxu0
        %v662 = vadd.f32 0.0, %v661
        %663 = vmatmul.f32.gmra.mxu0 %v619
        %v664 = vpop.f32.mrf.mxu0
        %v665 = vadd.f32 0.0, %v664
        %666 = vdwg.mxu0
        %v667 = vadd.f32 %v555, %v639
        %v668 = vadd.f32 %v578, %v662
        %v669 = vadd.f32 %v558, %v642
        %v670 = vadd.f32 %v581, %v665
        %s671 = scalar_lea.vmem %s2, 48
        %v672 = vld [vmem:[%s671] sm:$0xff]
        %v673 = vld [vmem:[%s671 + $0x8] sm:$0xff]
        %674 = vrot.lane.b32.xlu0 %v428, 125
        %v675 = vpop.permute.xlu0 %674
        %676 = vrot.lane.b32.xlu0 %v429, 125
        %v677 = vpop.permute.xlu0 %676
        %678 = vrot.lane.b32.xlu0 %v430, 125
        %v679 = vpop.permute.xlu0 %678
        %680 = vrot.lane.b32.xlu0 %v431, 125
        %v681 = vpop.permute.xlu0 %680
        %682 = vrot.lane.b32.xlu0 %v432, 125
        %v683 = vpop.permute.xlu0 %682
        %684 = vrot.lane.b32.xlu0 %v433, 125
        %v685 = vpop.permute.xlu0 %684
        %686 = vrot.lane.b32.xlu0 %v434, 125
        %v687 = vpop.permute.xlu0 %686
        %688 = vrot.lane.b32.xlu0 %v435, 125
        %v689 = vpop.permute.xlu0 %688
        %vm690 = vcmask 1022976
        %v691 = vsel %vm690, %v675, %v677
        %v692 = vsel %vm690, %v679, %v681
        %v693 = vsel %vm690, %v683, %v685
        %v694 = vsel %vm690, %v687, %v689
        %v704 = vsel %vm478, %v672, 0
        %v707 = vsel %vm478, %v673, 0
        %709 = vmatpush.msra.mxu0 0.0
        %710 = vmatpush.msra.mxu0 0.0
        %711 = vmatpush.msra.mxu0 0.0
        %712 = vmatpush.msra.mxu0 0.0
        %713 = vmatpush.msra.mxu0 0.0
        %714 = vmatpush.msra.mxu0 0.0
        %715 = vmatpush.msra.mxu0 0.0
        %716 = vmatpush.msra.mxu0 0.0
        %717 = vmatpush.msra.mxu0 0.0
        %718 = vmatpush.msra.mxu0 0.0
        %719 = vmatpush.msra.mxu0 0.0
        %720 = vmatpush.msra.mxu0 0.0
        %721 = vmatpush.msra.mxu0 %v694
        %722 = vmatpush.msra.mxu0 %v693
        %723 = vmatpush.msra.mxu0 %v692
        %724 = vmatpush.msra.mxu0 %v691
        %725 = vmatmul.f32.gmra.mxu0 %v704
        %v726 = vpop.f32.mrf.mxu0
        %v727 = vadd.f32 0.0, %v726
        %728 = vmatmul.f32.gmra.mxu0 %v707
        %v729 = vpop.f32.mrf.mxu0
        %v730 = vadd.f32 0.0, %v729
        %731 = vdwg.mxu0
        %732 = vmatpush.msra.mxu0 0.0
        %733 = vmatpush.msra.mxu0 0.0
        %734 = vmatpush.msra.mxu0 0.0
        %735 = vmatpush.msra.mxu0 0.0
        %736 = vmatpush.msra.mxu0 0.0
        %737 = vmatpush.msra.mxu0 0.0
        %738 = vmatpush.msra.mxu0 0.0
        %739 = vmatpush.msra.mxu0 0.0
        %740 = vmatpush.msra.mxu0 0.0
        %741 = vmatpush.msra.mxu0 0.0
        %742 = vmatpush.msra.mxu0 0.0
        %743 = vmatpush.msra.mxu0 0.0
        %744 = vmatpush.msra.mxu0 %v689
        %745 = vmatpush.msra.mxu0 %v685
        %746 = vmatpush.msra.mxu0 %v681
        %747 = vmatpush.msra.mxu0 %v677
        %748 = vmatmul.f32.gmra.mxu0 %v704
        %v749 = vpop.f32.mrf.mxu0
        %v750 = vadd.f32 0.0, %v749
        %751 = vmatmul.f32.gmra.mxu0 %v707
        %v752 = vpop.f32.mrf.mxu0
        %v753 = vadd.f32 0.0, %v752
        %754 = vdwg.mxu0
        %v755 = vadd.f32 %v667, %v727
        %v756 = vadd.f32 %v668, %v750
        %v757 = vadd.f32 %v669, %v730
        %v758 = vadd.f32 %v670, %v753
        %s759 = scalar_lea.vmem %s2, 64
        %v760 = vld [vmem:[%s759] sm:$0xff]
        %v761 = vld [vmem:[%s759 + $0x8] sm:$0xff]
        %762 = vrot.lane.b32.xlu0 %v428, 124
        %v763 = vpop.permute.xlu0 %762
        %764 = vrot.lane.b32.xlu0 %v429, 124
        %v765 = vpop.permute.xlu0 %764
        %766 = vrot.lane.b32.xlu0 %v430, 124
        %v767 = vpop.permute.xlu0 %766
        %768 = vrot.lane.b32.xlu0 %v431, 124
        %v769 = vpop.permute.xlu0 %768
        %770 = vrot.lane.b32.xlu0 %v432, 124
        %v771 = vpop.permute.xlu0 %770
        %772 = vrot.lane.b32.xlu0 %v433, 124
        %v773 = vpop.permute.xlu0 %772
        %774 = vrot.lane.b32.xlu0 %v434, 124
        %v775 = vpop.permute.xlu0 %774
        %776 = vrot.lane.b32.xlu0 %v435, 124
        %v777 = vpop.permute.xlu0 %776
        %vm778 = vcmask 1014784
        %v779 = vsel %vm778, %v763, %v765
        %v780 = vsel %vm778, %v767, %v769
        %v781 = vsel %vm778, %v771, %v773
        %v782 = vsel %vm778, %v775, %v777
        %v792 = vsel %vm478, %v760, 0
        %v795 = vsel %vm478, %v761, 0
        %797 = vmatpush.msra.mxu0 0.0
        %798 = vmatpush.msra.mxu0 0.0
        %799 = vmatpush.msra.mxu0 0.0
        %800 = vmatpush.msra.mxu0 0.0
        %801 = vmatpush.msra.mxu0 0.0
        %802 = vmatpush.msra.mxu0 0.0
        %803 = vmatpush.msra.mxu0 0.0
        %804 = vmatpush.msra.mxu0 0.0
        %805 = vmatpush.msra.mxu0 0.0
        %806 = vmatpush.msra.mxu0 0.0
        %807 = vmatpush.msra.mxu0 0.0
        %808 = vmatpush.msra.mxu0 0.0
        %809 = vmatpush.msra.mxu0 %v782
        %810 = vmatpush.msra.mxu0 %v781
        %811 = vmatpush.msra.mxu0 %v780
        %812 = vmatpush.msra.mxu0 %v779
        %813 = vmatmul.f32.gmra.mxu0 %v792
        %v814 = vpop.f32.mrf.mxu0
        %v815 = vadd.f32 0.0, %v814
        %816 = vmatmul.f32.gmra.mxu0 %v795
        %v817 = vpop.f32.mrf.mxu0
        %v818 = vadd.f32 0.0, %v817
        %819 = vdwg.mxu0
        %820 = vmatpush.msra.mxu0 0.0
        %821 = vmatpush.msra.mxu0 0.0
        %822 = vmatpush.msra.mxu0 0.0
        %823 = vmatpush.msra.mxu0 0.0
        %824 = vmatpush.msra.mxu0 0.0
        %825 = vmatpush.msra.mxu0 0.0
        %826 = vmatpush.msra.mxu0 0.0
        %827 = vmatpush.msra.mxu0 0.0
        %828 = vmatpush.msra.mxu0 0.0
        %829 = vmatpush.msra.mxu0 0.0
        %830 = vmatpush.msra.mxu0 0.0
        %831 = vmatpush.msra.mxu0 0.0
        %832 = vmatpush.msra.mxu0 %v777
        %833 = vmatpush.msra.mxu0 %v773
        %834 = vmatpush.msra.mxu0 %v769
        %835 = vmatpush.msra.mxu0 %v765
        %836 = vmatmul.f32.gmra.mxu0 %v792
        %v837 = vpop.f32.mrf.mxu0
        %v838 = vadd.f32 0.0, %v837
        %839 = vmatmul.f32.gmra.mxu0 %v795
        %v840 = vpop.f32.mrf.mxu0
        %v841 = vadd.f32 0.0, %v840
        %842 = vdwg.mxu0
        %v843 = vadd.f32 %v755, %v815
        %v844 = vadd.f32 %v756, %v838
        %v845 = vadd.f32 %v757, %v818
        %v846 = vadd.f32 %v758, %v841
        %s847 = scalar_lea.vmem %s2, 80
        %v848 = vld [vmem:[%s847] sm:$0xff]
        %v849 = vld [vmem:[%s847 + $0x8] sm:$0xff]
        %850 = vrot.lane.b32.xlu0 %v428, 123
        %v851 = vpop.permute.xlu0 %850
        %852 = vrot.lane.b32.xlu0 %v429, 123
        %v853 = vpop.permute.xlu0 %852
        %854 = vrot.lane.b32.xlu0 %v430, 123
        %v855 = vpop.permute.xlu0 %854
        %856 = vrot.lane.b32.xlu0 %v431, 123
        %v857 = vpop.permute.xlu0 %856
        %858 = vrot.lane.b32.xlu0 %v432, 123
        %v859 = vpop.permute.xlu0 %858
        %860 = vrot.lane.b32.xlu0 %v433, 123
        %v861 = vpop.permute.xlu0 %860
        %862 = vrot.lane.b32.xlu0 %v434, 123
        %v863 = vpop.permute.xlu0 %862
        %864 = vrot.lane.b32.xlu0 %v435, 123
        %v865 = vpop.permute.xlu0 %864
        %vm866 = vcmask 1006592
        %v867 = vsel %vm866, %v851, %v853
        %v868 = vsel %vm866, %v855, %v857
        %v869 = vsel %vm866, %v859, %v861
        %v870 = vsel %vm866, %v863, %v865
        %v880 = vsel %vm478, %v848, 0
        %v883 = vsel %vm478, %v849, 0
        %885 = vmatpush.msra.mxu0 0.0
        %886 = vmatpush.msra.mxu0 0.0
        %887 = vmatpush.msra.mxu0 0.0
        %888 = vmatpush.msra.mxu0 0.0
        %889 = vmatpush.msra.mxu0 0.0
        %890 = vmatpush.msra.mxu0 0.0
        %891 = vmatpush.msra.mxu0 0.0
        %892 = vmatpush.msra.mxu0 0.0
        %893 = vmatpush.msra.mxu0 0.0
        %894 = vmatpush.msra.mxu0 0.0
        %895 = vmatpush.msra.mxu0 0.0
        %896 = vmatpush.msra.mxu0 0.0
        %897 = vmatpush.msra.mxu0 %v870
        %898 = vmatpush.msra.mxu0 %v869
        %899 = vmatpush.msra.mxu0 %v868
        %900 = vmatpush.msra.mxu0 %v867
        %901 = vmatmul.f32.gmra.mxu0 %v880
        %v902 = vpop.f32.mrf.mxu0
        %v903 = vadd.f32 0.0, %v902
        %904 = vmatmul.f32.gmra.mxu0 %v883
        %v905 = vpop.f32.mrf.mxu0
        %v906 = vadd.f32 0.0, %v905
        %907 = vdwg.mxu0
        %908 = vmatpush.msra.mxu0 0.0
        %909 = vmatpush.msra.mxu0 0.0
        %910 = vmatpush.msra.mxu0 0.0
        %911 = vmatpush.msra.mxu0 0.0
        %912 = vmatpush.msra.mxu0 0.0
        %913 = vmatpush.msra.mxu0 0.0
        %914 = vmatpush.msra.mxu0 0.0
        %915 = vmatpush.msra.mxu0 0.0
        %916 = vmatpush.msra.mxu0 0.0
        %917 = vmatpush.msra.mxu0 0.0
        %918 = vmatpush.msra.mxu0 0.0
        %919 = vmatpush.msra.mxu0 0.0
        %920 = vmatpush.msra.mxu0 %v865
        %921 = vmatpush.msra.mxu0 %v861
        %922 = vmatpush.msra.mxu0 %v857
        %923 = vmatpush.msra.mxu0 %v853
        %924 = vmatmul.f32.gmra.mxu0 %v880
        %v925 = vpop.f32.mrf.mxu0
        %v926 = vadd.f32 0.0, %v925
        %927 = vmatmul.f32.gmra.mxu0 %v883
        %v928 = vpop.f32.mrf.mxu0
        %v929 = vadd.f32 0.0, %v928
        %930 = vdwg.mxu0
        %v931 = vadd.f32 %v843, %v903
        %v932 = vadd.f32 %v844, %v926
        %v933 = vadd.f32 %v845, %v906
        %v934 = vadd.f32 %v846, %v929
        %s935 = scalar_lea.vmem %s2, 96
        %v936 = vld [vmem:[%s935] sm:$0xff]
        %v937 = vld [vmem:[%s935 + $0x8] sm:$0xff]
        %938 = vrot.lane.b32.xlu0 %v428, 122
        %v939 = vpop.permute.xlu0 %938
        %940 = vrot.lane.b32.xlu0 %v429, 122
        %v941 = vpop.permute.xlu0 %940
        %942 = vrot.lane.b32.xlu0 %v430, 122
        %v943 = vpop.permute.xlu0 %942
        %944 = vrot.lane.b32.xlu0 %v431, 122
        %v945 = vpop.permute.xlu0 %944
        %946 = vrot.lane.b32.xlu0 %v432, 122
        %v947 = vpop.permute.xlu0 %946
        %948 = vrot.lane.b32.xlu0 %v433, 122
        %v949 = vpop.permute.xlu0 %948
        %950 = vrot.lane.b32.xlu0 %v434, 122
        %v951 = vpop.permute.xlu0 %950
        %952 = vrot.lane.b32.xlu0 %v435, 122
        %v953 = vpop.permute.xlu0 %952
        %vm954 = vcmask 998400
        %v955 = vsel %vm954, %v939, %v941
        %v956 = vsel %vm954, %v943, %v945
        %v957 = vsel %vm954, %v947, %v949
        %v958 = vsel %vm954, %v951, %v953
        %v968 = vsel %vm478, %v936, 0
        %v971 = vsel %vm478, %v937, 0
        %973 = vmatpush.msra.mxu0 0.0
        %974 = vmatpush.msra.mxu0 0.0
        %975 = vmatpush.msra.mxu0 0.0
        %976 = vmatpush.msra.mxu0 0.0
        %977 = vmatpush.msra.mxu0 0.0
        %978 = vmatpush.msra.mxu0 0.0
        %979 = vmatpush.msra.mxu0 0.0
        %980 = vmatpush.msra.mxu0 0.0
        %981 = vmatpush.msra.mxu0 0.0
        %982 = vmatpush.msra.mxu0 0.0
        %983 = vmatpush.msra.mxu0 0.0
        %984 = vmatpush.msra.mxu0 0.0
        %985 = vmatpush.msra.mxu0 %v958
        %986 = vmatpush.msra.mxu0 %v957
        %987 = vmatpush.msra.mxu0 %v956
        %988 = vmatpush.msra.mxu0 %v955
        %989 = vmatmul.f32.gmra.mxu0 %v968
        %v990 = vpop.f32.mrf.mxu0
        %v991 = vadd.f32 0.0, %v990
        %992 = vmatmul.f32.gmra.mxu0 %v971
        %v993 = vpop.f32.mrf.mxu0
        %v994 = vadd.f32 0.0, %v993
        %995 = vdwg.mxu0
        %996 = vmatpush.msra.mxu0 0.0
        %997 = vmatpush.msra.mxu0 0.0
        %998 = vmatpush.msra.mxu0 0.0
        %999 = vmatpush.msra.mxu0 0.0
        %1000 = vmatpush.msra.mxu0 0.0
        %1001 = vmatpush.msra.mxu0 0.0
        %1002 = vmatpush.msra.mxu0 0.0
        %1003 = vmatpush.msra.mxu0 0.0
        %1004 = vmatpush.msra.mxu0 0.0
        %1005 = vmatpush.msra.mxu0 0.0
        %1006 = vmatpush.msra.mxu0 0.0
        %1007 = vmatpush.msra.mxu0 0.0
        %1008 = vmatpush.msra.mxu0 %v953
        %1009 = vmatpush.msra.mxu0 %v949
        %1010 = vmatpush.msra.mxu0 %v945
        %1011 = vmatpush.msra.mxu0 %v941
        %1012 = vmatmul.f32.gmra.mxu0 %v968
        %v1013 = vpop.f32.mrf.mxu0
        %v1014 = vadd.f32 0.0, %v1013
        %1015 = vmatmul.f32.gmra.mxu0 %v971
        %v1016 = vpop.f32.mrf.mxu0
        %v1017 = vadd.f32 0.0, %v1016
        %1018 = vdwg.mxu0
        %v1019 = vadd.f32 %v931, %v991
        %v1020 = vadd.f32 %v932, %v1014
        %v1021 = vadd.f32 %v933, %v994
        %v1022 = vadd.f32 %v934, %v1017
        %s1023 = scalar_lea.vmem %s2, 112
        %v1024 = vld [vmem:[%s1023] sm:$0xff]
        %v1025 = vld [vmem:[%s1023 + $0x8] sm:$0xff]
        %1026 = vrot.lane.b32.xlu0 %v428, 121
        %v1027 = vpop.permute.xlu0 %1026
        %1028 = vrot.lane.b32.xlu0 %v429, 121
        %v1029 = vpop.permute.xlu0 %1028
        %1030 = vrot.lane.b32.xlu0 %v430, 121
        %v1031 = vpop.permute.xlu0 %1030
        %1032 = vrot.lane.b32.xlu0 %v431, 121
        %v1033 = vpop.permute.xlu0 %1032
        %1034 = vrot.lane.b32.xlu0 %v432, 121
        %v1035 = vpop.permute.xlu0 %1034
        %1036 = vrot.lane.b32.xlu0 %v433, 121
        %v1037 = vpop.permute.xlu0 %1036
        %1038 = vrot.lane.b32.xlu0 %v434, 121
        %v1039 = vpop.permute.xlu0 %1038
        %1040 = vrot.lane.b32.xlu0 %v435, 121
        %v1041 = vpop.permute.xlu0 %1040
        %vm1042 = vcmask 990208
        %v1043 = vsel %vm1042, %v1027, %v1029
        %v1044 = vsel %vm1042, %v1031, %v1033
        %v1045 = vsel %vm1042, %v1035, %v1037
        %v1046 = vsel %vm1042, %v1039, %v1041
        %v1056 = vsel %vm478, %v1024, 0
        %v1059 = vsel %vm478, %v1025, 0
        %1061 = vmatpush.msra.mxu0 0.0
        %1062 = vmatpush.msra.mxu0 0.0
        %1063 = vmatpush.msra.mxu0 0.0
        %1064 = vmatpush.msra.mxu0 0.0
        %1065 = vmatpush.msra.mxu0 0.0
        %1066 = vmatpush.msra.mxu0 0.0
        %1067 = vmatpush.msra.mxu0 0.0
        %1068 = vmatpush.msra.mxu0 0.0
        %1069 = vmatpush.msra.mxu0 0.0
        %1070 = vmatpush.msra.mxu0 0.0
        %1071 = vmatpush.msra.mxu0 0.0
        %1072 = vmatpush.msra.mxu0 0.0
        %1073 = vmatpush.msra.mxu0 %v1046
        %1074 = vmatpush.msra.mxu0 %v1045
        %1075 = vmatpush.msra.mxu0 %v1044
        %1076 = vmatpush.msra.mxu0 %v1043
        %1077 = vmatmul.f32.gmra.mxu0 %v1056
        %v1078 = vpop.f32.mrf.mxu0
        %v1079 = vadd.f32 0.0, %v1078
        %1080 = vmatmul.f32.gmra.mxu0 %v1059
        %v1081 = vpop.f32.mrf.mxu0
        %v1082 = vadd.f32 0.0, %v1081
        %1083 = vdwg.mxu0
        %1084 = vmatpush.msra.mxu0 0.0
        %1085 = vmatpush.msra.mxu0 0.0
        %1086 = vmatpush.msra.mxu0 0.0
        %1087 = vmatpush.msra.mxu0 0.0
        %1088 = vmatpush.msra.mxu0 0.0
        %1089 = vmatpush.msra.mxu0 0.0
        %1090 = vmatpush.msra.mxu0 0.0
        %1091 = vmatpush.msra.mxu0 0.0
        %1092 = vmatpush.msra.mxu0 0.0
        %1093 = vmatpush.msra.mxu0 0.0
        %1094 = vmatpush.msra.mxu0 0.0
        %1095 = vmatpush.msra.mxu0 0.0
        %1096 = vmatpush.msra.mxu0 %v1041
        %1097 = vmatpush.msra.mxu0 %v1037
        %1098 = vmatpush.msra.mxu0 %v1033
        %1099 = vmatpush.msra.mxu0 %v1029
        %1100 = vmatmul.f32.gmra.mxu0 %v1056
        %v1101 = vpop.f32.mrf.mxu0
        %v1102 = vadd.f32 0.0, %v1101
        %1103 = vmatmul.f32.gmra.mxu0 %v1059
        %v1104 = vpop.f32.mrf.mxu0
        %v1105 = vadd.f32 0.0, %v1104
        %1106 = vdwg.mxu0
        %v1107 = vadd.f32 %v1019, %v1079
        %v1108 = vadd.f32 %v1020, %v1102
        %v1109 = vadd.f32 %v1021, %v1082
        %v1110 = vadd.f32 %v1022, %v1105
        %s1111 = scalar_lea.vmem %s2, 128
        %v1112 = vld [vmem:[%s1111] sm:$0xff]
        %v1113 = vld [vmem:[%s1111 + $0x8] sm:$0xff]
        %1114 = vrot.lane.b32.xlu0 %v428, 120
        %v1115 = vpop.permute.xlu0 %1114
        %1116 = vrot.lane.b32.xlu0 %v429, 120
        %v1117 = vpop.permute.xlu0 %1116
        %1118 = vrot.lane.b32.xlu0 %v430, 120
        %v1119 = vpop.permute.xlu0 %1118
        %1120 = vrot.lane.b32.xlu0 %v431, 120
        %v1121 = vpop.permute.xlu0 %1120
        %1122 = vrot.lane.b32.xlu0 %v432, 120
        %v1123 = vpop.permute.xlu0 %1122
        %1124 = vrot.lane.b32.xlu0 %v433, 120
        %v1125 = vpop.permute.xlu0 %1124
        %1126 = vrot.lane.b32.xlu0 %v434, 120
        %v1127 = vpop.permute.xlu0 %1126
        %1128 = vrot.lane.b32.xlu0 %v435, 120
        %v1129 = vpop.permute.xlu0 %1128
        %vm1130 = vcmask 982016
        %v1131 = vsel %vm1130, %v1115, %v1117
        %v1132 = vsel %vm1130, %v1119, %v1121
        %v1133 = vsel %vm1130, %v1123, %v1125
        %v1134 = vsel %vm1130, %v1127, %v1129
        %v1144 = vsel %vm478, %v1112, 0
        %v1147 = vsel %vm478, %v1113, 0
        %1149 = vmatpush.msra.mxu0 0.0
        %1150 = vmatpush.msra.mxu0 0.0
        %1151 = vmatpush.msra.mxu0 0.0
        %1152 = vmatpush.msra.mxu0 0.0
        %1153 = vmatpush.msra.mxu0 0.0
        %1154 = vmatpush.msra.mxu0 0.0
        %1155 = vmatpush.msra.mxu0 0.0
        %1156 = vmatpush.msra.mxu0 0.0
        %1157 = vmatpush.msra.mxu0 0.0
        %1158 = vmatpush.msra.mxu0 0.0
        %1159 = vmatpush.msra.mxu0 0.0
        %1160 = vmatpush.msra.mxu0 0.0
        %1161 = vmatpush.msra.mxu0 %v1134
        %1162 = vmatpush.msra.mxu0 %v1133
        %1163 = vmatpush.msra.mxu0 %v1132
        %1164 = vmatpush.msra.mxu0 %v1131
        %1165 = vmatmul.f32.gmra.mxu0 %v1144
        %v1166 = vpop.f32.mrf.mxu0
        %v1167 = vadd.f32 0.0, %v1166
        %1168 = vmatmul.f32.gmra.mxu0 %v1147
        %v1169 = vpop.f32.mrf.mxu0
        %v1170 = vadd.f32 0.0, %v1169
        %1171 = vdwg.mxu0
        %1172 = vmatpush.msra.mxu0 0.0
        %1173 = vmatpush.msra.mxu0 0.0
        %1174 = vmatpush.msra.mxu0 0.0
        %1175 = vmatpush.msra.mxu0 0.0
        %1176 = vmatpush.msra.mxu0 0.0
        %1177 = vmatpush.msra.mxu0 0.0
        %1178 = vmatpush.msra.mxu0 0.0
        %1179 = vmatpush.msra.mxu0 0.0
        %1180 = vmatpush.msra.mxu0 0.0
        %1181 = vmatpush.msra.mxu0 0.0
        %1182 = vmatpush.msra.mxu0 0.0
        %1183 = vmatpush.msra.mxu0 0.0
        %1184 = vmatpush.msra.mxu0 %v1129
        %1185 = vmatpush.msra.mxu0 %v1125
        %1186 = vmatpush.msra.mxu0 %v1121
        %1187 = vmatpush.msra.mxu0 %v1117
        %1188 = vmatmul.f32.gmra.mxu0 %v1144
        %v1189 = vpop.f32.mrf.mxu0
        %v1190 = vadd.f32 0.0, %v1189
        %1191 = vmatmul.f32.gmra.mxu0 %v1147
        %v1192 = vpop.f32.mrf.mxu0
        %v1193 = vadd.f32 0.0, %v1192
        %1194 = vdwg.mxu0
        %v1195 = vadd.f32 %v1107, %v1167
        %v1196 = vadd.f32 %v1108, %v1190
        %v1197 = vadd.f32 %v1109, %v1170
        %v1198 = vadd.f32 %v1110, %v1193
        %v1199 = vld [vmem:[%s3] sm:$0xff]
        %v1200 = vld [vmem:[%s3 + $0x8] sm:$0xff]
        %1202 = vset.pattern.permute.xlu0 0
        %1203 = vperm.xlu0 %1202, %v1199
        %v1204 = vpop.permute.xlu0 %1203
        %1207 = vset.pattern.permute.xlu0 0
        %1208 = vperm.xlu0 %1207, %v1200
        %v1209 = vpop.permute.xlu0 %1208
        %v1211 = vadd.f32 %v1195, %v1204
        %v1212 = vadd.f32 %v1196, %v1204
        %v1213 = vadd.f32 %v1197, %v1209
        %v1214 = vadd.f32 %v1198, %v1209
        %v1215 = vmax.f32 %v1211, 0.0
        %v1216 = vmax.f32 %v1212, 0.0
        %v1217 = vmax.f32 %v1213, 0.0
        %v1218 = vmax.f32 %v1214, 0.0
        %1223 = vrot.lane.b32.xlu0 %v1215, 127
        %v1224 = vpop.permute.xlu0 %1223
        %1225 = vrot.lane.b32.xlu0 %v1216, 127
        %v1226 = vpop.permute.xlu0 %1225
        %1227 = vrot.lane.b32.xlu0 %v1217, 127
        %v1228 = vpop.permute.xlu0 %1227
        %1229 = vrot.lane.b32.xlu0 %v1218, 127
        %v1230 = vpop.permute.xlu0 %1229
        %v1231 = vsel %vm465, %v1224, %v1226
        %v1232 = vsel %vm465, %v1228, %v1230
        %1237 = vrot.lane.b32.xlu0 %v1215, 63
        %v1238 = vpop.permute.xlu0 %1237
        %1239 = vrot.lane.b32.xlu0 %v1217, 63
        %v1240 = vpop.permute.xlu0 %1239
        %vm1243 = vcmask 515072
        %v1244 = vsel %vm1243, %v1226, %v1238
        %v1245 = vsel %vm1243, %v1230, %v1240
        %v1246 = vmax.f32 %v1215, %v1231
        %v1247 = vmax.f32 %v1216, %v1244
        %v1248 = vmax.f32 %v1217, %v1232
        %v1249 = vmax.f32 %v1218, %v1245
        %v1250 = vld [vmem:[%s6] sm:$0xff]
        %v1251 = vld [vmem:[%s6 + $0x8] sm:$0xff]
        %v1252 = vld [vmem:[%s6 + $0x10] sm:$0xff]
        %v1253 = vld [vmem:[%s6 + $0x18] sm:$0xff]
        %v1254 = vld [vmem:[%s6 + $0x20] sm:$0xff]
        %v1255 = vld [vmem:[%s6 + $0x28] sm:$0xff]
        %v1256 = vld [vmem:[%s6 + $0x30] sm:$0xff]
        %v1257 = vld [vmem:[%s6 + $0x38] sm:$0xff]
        %v1258 = vld [vmem:[%s6 + $0x40] sm:$0xff]
        %v1259 = vld [vmem:[%s6 + $0x48] sm:$0xff]
        %v1260 = vld [vmem:[%s6 + $0x50] sm:$0xff]
        %v1261 = vld [vmem:[%s6 + $0x58] sm:$0xff]
        %v1262 = vld [vmem:[%s6 + $0x60] sm:$0xff]
        %v1263 = vld [vmem:[%s6 + $0x68] sm:$0xff]
        %v1264 = vld [vmem:[%s6 + $0x70] sm:$0xff]
        %v1265 = vld [vmem:[%s6 + $0x78] sm:$0xff]
        %v1266 = vld [vmem:[%s6 + $0x80] sm:$0xff]
        %v1267 = vld [vmem:[%s6 + $0x88] sm:$0xff]
        %v1268 = vld [vmem:[%s6 + $0x90] sm:$0xff]
        %v1269 = vld [vmem:[%s6 + $0x98] sm:$0xff]
        %v1270 = vld [vmem:[%s6 + $0xa0] sm:$0xff]
        %v1271 = vld [vmem:[%s6 + $0xa8] sm:$0xff]
        %v1272 = vld [vmem:[%s6 + $0xb0] sm:$0xff]
        %v1273 = vld [vmem:[%s6 + $0xb8] sm:$0xff]
        %vm1274 = vcmask 523264
        %v1276 = vsel %vm1274, %v1247, 0
        %v1279 = vsel %vm1274, %v1249, 0
        %1281 = vmatpush.msra.mxu0 %v1265
        %1282 = vmatpush.msra.mxu0 %v1264
        %1283 = vmatpush.msra.mxu0 %v1263
        %1284 = vmatpush.msra.mxu0 %v1262
        %1285 = vmatpush.msra.mxu0 %v1261
        %1286 = vmatpush.msra.mxu0 %v1260
        %1287 = vmatpush.msra.mxu0 %v1259
        %1288 = vmatpush.msra.mxu0 %v1258
        %1289 = vmatpush.msra.mxu0 %v1257
        %1290 = vmatpush.msra.mxu0 %v1256
        %1291 = vmatpush.msra.mxu0 %v1255
        %1292 = vmatpush.msra.mxu0 %v1254
        %1293 = vmatpush.msra.mxu0 %v1253
        %1294 = vmatpush.msra.mxu0 %v1252
        %1295 = vmatpush.msra.mxu0 %v1251
        %1296 = vmatpush.msra.mxu0 %v1250
        %1297 = vmatmul.f32.gmra.mxu0 %v1246
        %v1298 = vpop.f32.mrf.mxu0
        %v1299 = vadd.f32 0.0, %v1298
        %1300 = vmatmul.f32.gmra.mxu0 %v1248
        %v1301 = vpop.f32.mrf.mxu0
        %v1302 = vadd.f32 0.0, %v1301
        %1303 = vdwg.mxu0
        %1304 = vmatpush.msra.mxu0 0.0
        %1305 = vmatpush.msra.mxu0 0.0
        %1306 = vmatpush.msra.mxu0 0.0
        %1307 = vmatpush.msra.mxu0 0.0
        %1308 = vmatpush.msra.mxu0 0.0
        %1309 = vmatpush.msra.mxu0 0.0
        %1310 = vmatpush.msra.mxu0 0.0
        %1311 = vmatpush.msra.mxu0 0.0
        %1312 = vmatpush.msra.mxu0 %v1273
        %1313 = vmatpush.msra.mxu0 %v1272
        %1314 = vmatpush.msra.mxu0 %v1271
        %1315 = vmatpush.msra.mxu0 %v1270
        %1316 = vmatpush.msra.mxu0 %v1269
        %1317 = vmatpush.msra.mxu0 %v1268
        %1318 = vmatpush.msra.mxu0 %v1267
        %1319 = vmatpush.msra.mxu0 %v1266
        %1320 = vmatmul.f32.gmra.mxu0 %v1276
        %v1321 = vpop.f32.mrf.mxu0
        %v1322 = vadd.f32 %v1299, %v1321
        %1323 = vmatmul.f32.gmra.mxu0 %v1279
        %v1324 = vpop.f32.mrf.mxu0
        %v1325 = vadd.f32 %v1302, %v1324
        %1326 = vdwg.mxu0
        %v1327 = vld [vmem:[%s4] sm:$0xff]
        %v1328 = vld [vmem:[%s4 + $0x8] sm:$0xff]
        %v1329 = vld [vmem:[%s4 + $0x10] sm:$0xff]
        %v1330 = vld [vmem:[%s4 + $0x18] sm:$0xff]
        %s1331 = scalar_lea.vmem %s4, 32
        %v1332 = vld [vmem:[%s1331] sm:$0xff]
        %v1333 = vld [vmem:[%s1331 + $0x8] sm:$0xff]
        %v1334 = vld [vmem:[%s1331 + $0x10] sm:$0xff]
        %v1335 = vld [vmem:[%s1331 + $0x18] sm:$0xff]
        %1338 = vrot.lane.b32.xlu0 %v1322, 127
        %v1339 = vpop.permute.xlu0 %1338
        %1340 = vrot.lane.b32.xlu0 %v1325, 127
        %v1341 = vpop.permute.xlu0 %1340
        %vm1344 = vcmask 130048
        %v1346 = vsel %vm1344, %v1332, 0
        %v1349 = vsel %vm1344, %v1333, 0
        %v1352 = vsel %vm1344, %v1334, 0
        %v1355 = vsel %vm1344, %v1335, 0
        %1357 = vmatpush.msra.mxu0 0.0
        %1358 = vmatpush.msra.mxu0 0.0
        %1359 = vmatpush.msra.mxu0 0.0
        %1360 = vmatpush.msra.mxu0 0.0
        %1361 = vmatpush.msra.mxu0 0.0
        %1362 = vmatpush.msra.mxu0 0.0
        %1363 = vmatpush.msra.mxu0 0.0
        %1364 = vmatpush.msra.mxu0 0.0
        %1365 = vmatpush.msra.mxu0 0.0
        %1366 = vmatpush.msra.mxu0 0.0
        %1367 = vmatpush.msra.mxu0 0.0
        %1368 = vmatpush.msra.mxu0 0.0
        %1369 = vmatpush.msra.mxu0 0.0
        %1370 = vmatpush.msra.mxu0 0.0
        %1371 = vmatpush.msra.mxu0 %v1341
        %1372 = vmatpush.msra.mxu0 %v1339
        %1373 = vmatmul.f32.gmra.mxu0 %v1346
        %v1374 = vpop.f32.mrf.mxu0
        %v1375 = vadd.f32 0.0, %v1374
        %1376 = vmatmul.f32.gmra.mxu0 %v1349
        %v1377 = vpop.f32.mrf.mxu0
        %v1378 = vadd.f32 0.0, %v1377
        %1379 = vmatmul.f32.gmra.mxu0 %v1352
        %v1380 = vpop.f32.mrf.mxu0
        %v1381 = vadd.f32 0.0, %v1380
        %1382 = vmatmul.f32.gmra.mxu0 %v1355
        %v1383 = vpop.f32.mrf.mxu0
        %v1384 = vadd.f32 0.0, %v1383
        %1385 = vdwg.mxu0
        %v1387 = vsel %vm1344, %v1327, 0
        %v1390 = vsel %vm1344, %v1328, 0
        %v1393 = vsel %vm1344, %v1329, 0
        %v1396 = vsel %vm1344, %v1330, 0
        %1398 = vmatpush.msra.mxu0 0.0
        %1399 = vmatpush.msra.mxu0 0.0
        %1400 = vmatpush.msra.mxu0 0.0
        %1401 = vmatpush.msra.mxu0 0.0
        %1402 = vmatpush.msra.mxu0 0.0
        %1403 = vmatpush.msra.mxu0 0.0
        %1404 = vmatpush.msra.mxu0 0.0
        %1405 = vmatpush.msra.mxu0 0.0
        %1406 = vmatpush.msra.mxu0 0.0
        %1407 = vmatpush.msra.mxu0 0.0
        %1408 = vmatpush.msra.mxu0 0.0
        %1409 = vmatpush.msra.mxu0 0.0
        %1410 = vmatpush.msra.mxu0 0.0
        %1411 = vmatpush.msra.mxu0 0.0
        %1412 = vmatpush.msra.mxu0 %v1325
        %1413 = vmatpush.msra.mxu0 %v1322
        %1414 = vmatmul.f32.gmra.mxu0 %v1387
        %v1415 = vpop.f32.mrf.mxu0
        %v1416 = vadd.f32 %v1375, %v1415
        %1417 = vmatmul.f32.gmra.mxu0 %v1390
        %v1418 = vpop.f32.mrf.mxu0
        %v1419 = vadd.f32 %v1378, %v1418
        %1420 = vmatmul.f32.gmra.mxu0 %v1393
        %v1421 = vpop.f32.mrf.mxu0
        %v1422 = vadd.f32 %v1381, %v1421
        %1423 = vmatmul.f32.gmra.mxu0 %v1396
        %v1424 = vpop.f32.mrf.mxu0
        %v1425 = vadd.f32 %v1384, %v1424
        %1426 = vdwg.mxu0
        %s1427 = scalar_lea.vmem %s4, 64
        %v1428 = vld [vmem:[%s1427] sm:$0xff]
        %v1429 = vld [vmem:[%s1427 + $0x8] sm:$0xff]
        %v1430 = vld [vmem:[%s1427 + $0x10] sm:$0xff]
        %v1431 = vld [vmem:[%s1427 + $0x18] sm:$0xff]
        %1432 = vrot.lane.b32.xlu0 %v1322, 126
        %v1433 = vpop.permute.xlu0 %1432
        %1434 = vrot.lane.b32.xlu0 %v1325, 126
        %v1435 = vpop.permute.xlu0 %1434
        %v1439 = vsel %vm1344, %v1428, 0
        %v1442 = vsel %vm1344, %v1429, 0
        %v1445 = vsel %vm1344, %v1430, 0
        %v1448 = vsel %vm1344, %v1431, 0
        %1450 = vmatpush.msra.mxu0 0.0
        %1451 = vmatpush.msra.mxu0 0.0
        %1452 = vmatpush.msra.mxu0 0.0
        %1453 = vmatpush.msra.mxu0 0.0
        %1454 = vmatpush.msra.mxu0 0.0
        %1455 = vmatpush.msra.mxu0 0.0
        %1456 = vmatpush.msra.mxu0 0.0
        %1457 = vmatpush.msra.mxu0 0.0
        %1458 = vmatpush.msra.mxu0 0.0
        %1459 = vmatpush.msra.mxu0 0.0
        %1460 = vmatpush.msra.mxu0 0.0
        %1461 = vmatpush.msra.mxu0 0.0
        %1462 = vmatpush.msra.mxu0 0.0
        %1463 = vmatpush.msra.mxu0 0.0
        %1464 = vmatpush.msra.mxu0 %v1435
        %1465 = vmatpush.msra.mxu0 %v1433
        %1466 = vmatmul.f32.gmra.mxu0 %v1439
        %v1467 = vpop.f32.mrf.mxu0
        %v1468 = vadd.f32 0.0, %v1467
        %1469 = vmatmul.f32.gmra.mxu0 %v1442
        %v1470 = vpop.f32.mrf.mxu0
        %v1471 = vadd.f32 0.0, %v1470
        %1472 = vmatmul.f32.gmra.mxu0 %v1445
        %v1473 = vpop.f32.mrf.mxu0
        %v1474 = vadd.f32 0.0, %v1473
        %1475 = vmatmul.f32.gmra.mxu0 %v1448
        %v1476 = vpop.f32.mrf.mxu0
        %v1477 = vadd.f32 0.0, %v1476
        %1478 = vdwg.mxu0
        %v1479 = vadd.f32 %v1416, %v1468
        %v1480 = vadd.f32 %v1419, %v1471
        %v1481 = vadd.f32 %v1422, %v1474
        %v1482 = vadd.f32 %v1425, %v1477
        %s1483 = scalar_lea.vmem %s4, 96
        %v1484 = vld [vmem:[%s1483] sm:$0xff]
        %v1485 = vld [vmem:[%s1483 + $0x8] sm:$0xff]
        %v1486 = vld [vmem:[%s1483 + $0x10] sm:$0xff]
        %v1487 = vld [vmem:[%s1483 + $0x18] sm:$0xff]
        %1488 = vrot.lane.b32.xlu0 %v1322, 125
        %v1489 = vpop.permute.xlu0 %1488
        %1490 = vrot.lane.b32.xlu0 %v1325, 125
        %v1491 = vpop.permute.xlu0 %1490
        %v1495 = vsel %vm1344, %v1484, 0
        %v1498 = vsel %vm1344, %v1485, 0
        %v1501 = vsel %vm1344, %v1486, 0
        %v1504 = vsel %vm1344, %v1487, 0
        %1506 = vmatpush.msra.mxu0 0.0
        %1507 = vmatpush.msra.mxu0 0.0
        %1508 = vmatpush.msra.mxu0 0.0
        %1509 = vmatpush.msra.mxu0 0.0
        %1510 = vmatpush.msra.mxu0 0.0
        %1511 = vmatpush.msra.mxu0 0.0
        %1512 = vmatpush.msra.mxu0 0.0
        %1513 = vmatpush.msra.mxu0 0.0
        %1514 = vmatpush.msra.mxu0 0.0
        %1515 = vmatpush.msra.mxu0 0.0
        %1516 = vmatpush.msra.mxu0 0.0
        %1517 = vmatpush.msra.mxu0 0.0
        %1518 = vmatpush.msra.mxu0 0.0
        %1519 = vmatpush.msra.mxu0 0.0
        %1520 = vmatpush.msra.mxu0 %v1491
        %1521 = vmatpush.msra.mxu0 %v1489
        %1522 = vmatmul.f32.gmra.mxu0 %v1495
        %v1523 = vpop.f32.mrf.mxu0
        %v1524 = vadd.f32 0.0, %v1523
        %1525 = vmatmul.f32.gmra.mxu0 %v1498
        %v1526 = vpop.f32.mrf.mxu0
        %v1527 = vadd.f32 0.0, %v1526
        %1528 = vmatmul.f32.gmra.mxu0 %v1501
        %v1529 = vpop.f32.mrf.mxu0
        %v1530 = vadd.f32 0.0, %v1529
        %1531 = vmatmul.f32.gmra.mxu0 %v1504
        %v1532 = vpop.f32.mrf.mxu0
        %v1533 = vadd.f32 0.0, %v1532
        %1534 = vdwg.mxu0
        %v1535 = vadd.f32 %v1479, %v1524
        %v1536 = vadd.f32 %v1480, %v1527
        %v1537 = vadd.f32 %v1481, %v1530
        %v1538 = vadd.f32 %v1482, %v1533
        %s1539 = scalar_lea.vmem %s4, 128
        %v1540 = vld [vmem:[%s1539] sm:$0xff]
        %v1541 = vld [vmem:[%s1539 + $0x8] sm:$0xff]
        %v1542 = vld [vmem:[%s1539 + $0x10] sm:$0xff]
        %v1543 = vld [vmem:[%s1539 + $0x18] sm:$0xff]
        %1544 = vrot.lane.b32.xlu0 %v1322, 124
        %v1545 = vpop.permute.xlu0 %1544
        %1546 = vrot.lane.b32.xlu0 %v1325, 124
        %v1547 = vpop.permute.xlu0 %1546
        %v1551 = vsel %vm1344, %v1540, 0
        %v1554 = vsel %vm1344, %v1541, 0
        %v1557 = vsel %vm1344, %v1542, 0
        %v1560 = vsel %vm1344, %v1543, 0
        %1562 = vmatpush.msra.mxu0 0.0
        %1563 = vmatpush.msra.mxu0 0.0
        %1564 = vmatpush.msra.mxu0 0.0
        %1565 = vmatpush.msra.mxu0 0.0
        %1566 = vmatpush.msra.mxu0 0.0
        %1567 = vmatpush.msra.mxu0 0.0
        %1568 = vmatpush.msra.mxu0 0.0
        %1569 = vmatpush.msra.mxu0 0.0
        %1570 = vmatpush.msra.mxu0 0.0
        %1571 = vmatpush.msra.mxu0 0.0
        %1572 = vmatpush.msra.mxu0 0.0
        %1573 = vmatpush.msra.mxu0 0.0
        %1574 = vmatpush.msra.mxu0 0.0
        %1575 = vmatpush.msra.mxu0 0.0
        %1576 = vmatpush.msra.mxu0 %v1547
        %1577 = vmatpush.msra.mxu0 %v1545
        %1578 = vmatmul.f32.gmra.mxu0 %v1551
        %v1579 = vpop.f32.mrf.mxu0
        %v1580 = vadd.f32 0.0, %v1579
        %1581 = vmatmul.f32.gmra.mxu0 %v1554
        %v1582 = vpop.f32.mrf.mxu0
        %v1583 = vadd.f32 0.0, %v1582
        %1584 = vmatmul.f32.gmra.mxu0 %v1557
        %v1585 = vpop.f32.mrf.mxu0
        %v1586 = vadd.f32 0.0, %v1585
        %1587 = vmatmul.f32.gmra.mxu0 %v1560
        %v1588 = vpop.f32.mrf.mxu0
        %v1589 = vadd.f32 0.0, %v1588
        %1590 = vdwg.mxu0
        %v1591 = vadd.f32 %v1535, %v1580
        %v1592 = vadd.f32 %v1536, %v1583
        %v1593 = vadd.f32 %v1537, %v1586
        %v1594 = vadd.f32 %v1538, %v1589
        %s1595 = scalar_lea.vmem %s4, 160
        %v1596 = vld [vmem:[%s1595] sm:$0xff]
        %v1597 = vld [vmem:[%s1595 + $0x8] sm:$0xff]
        %v1598 = vld [vmem:[%s1595 + $0x10] sm:$0xff]
        %v1599 = vld [vmem:[%s1595 + $0x18] sm:$0xff]
        %1600 = vrot.lane.b32.xlu0 %v1322, 123
        %v1601 = vpop.permute.xlu0 %1600
        %1602 = vrot.lane.b32.xlu0 %v1325, 123
        %v1603 = vpop.permute.xlu0 %1602
        %v1607 = vsel %vm1344, %v1596, 0
        %v1610 = vsel %vm1344, %v1597, 0
        %v1613 = vsel %vm1344, %v1598, 0
        %v1616 = vsel %vm1344, %v1599, 0
        %1618 = vmatpush.msra.mxu0 0.0
        %1619 = vmatpush.msra.mxu0 0.0
        %1620 = vmatpush.msra.mxu0 0.0
        %1621 = vmatpush.msra.mxu0 0.0
        %1622 = vmatpush.msra.mxu0 0.0
        %1623 = vmatpush.msra.mxu0 0.0
        %1624 = vmatpush.msra.mxu0 0.0
        %1625 = vmatpush.msra.mxu0 0.0
        %1626 = vmatpush.msra.mxu0 0.0
        %1627 = vmatpush.msra.mxu0 0.0
        %1628 = vmatpush.msra.mxu0 0.0
        %1629 = vmatpush.msra.mxu0 0.0
        %1630 = vmatpush.msra.mxu0 0.0
        %1631 = vmatpush.msra.mxu0 0.0
        %1632 = vmatpush.msra.mxu0 %v1603
        %1633 = vmatpush.msra.mxu0 %v1601
        %1634 = vmatmul.f32.gmra.mxu0 %v1607
        %v1635 = vpop.f32.mrf.mxu0
        %v1636 = vadd.f32 0.0, %v1635
        %1637 = vmatmul.f32.gmra.mxu0 %v1610
        %v1638 = vpop.f32.mrf.mxu0
        %v1639 = vadd.f32 0.0, %v1638
        %1640 = vmatmul.f32.gmra.mxu0 %v1613
        %v1641 = vpop.f32.mrf.mxu0
        %v1642 = vadd.f32 0.0, %v1641
        %1643 = vmatmul.f32.gmra.mxu0 %v1616
        %v1644 = vpop.f32.mrf.mxu0
        %v1645 = vadd.f32 0.0, %v1644
        %1646 = vdwg.mxu0
        %v1647 = vadd.f32 %v1591, %v1636
        %v1648 = vadd.f32 %v1592, %v1639
        %v1649 = vadd.f32 %v1593, %v1642
        %v1650 = vadd.f32 %v1594, %v1645
        %s1651 = scalar_lea.vmem %s4, 192
        %v1652 = vld [vmem:[%s1651] sm:$0xff]
        %v1653 = vld [vmem:[%s1651 + $0x8] sm:$0xff]
        %v1654 = vld [vmem:[%s1651 + $0x10] sm:$0xff]
        %v1655 = vld [vmem:[%s1651 + $0x18] sm:$0xff]
        %1656 = vrot.lane.b32.xlu0 %v1322, 122
        %v1657 = vpop.permute.xlu0 %1656
        %1658 = vrot.lane.b32.xlu0 %v1325, 122
        %v1659 = vpop.permute.xlu0 %1658
        %v1663 = vsel %vm1344, %v1652, 0
        %v1666 = vsel %vm1344, %v1653, 0
        %v1669 = vsel %vm1344, %v1654, 0
        %v1672 = vsel %vm1344, %v1655, 0
        %1674 = vmatpush.msra.mxu0 0.0
        %1675 = vmatpush.msra.mxu0 0.0
        %1676 = vmatpush.msra.mxu0 0.0
        %1677 = vmatpush.msra.mxu0 0.0
        %1678 = vmatpush.msra.mxu0 0.0
        %1679 = vmatpush.msra.mxu0 0.0
        %1680 = vmatpush.msra.mxu0 0.0
        %1681 = vmatpush.msra.mxu0 0.0
        %1682 = vmatpush.msra.mxu0 0.0
        %1683 = vmatpush.msra.mxu0 0.0
        %1684 = vmatpush.msra.mxu0 0.0
        %1685 = vmatpush.msra.mxu0 0.0
        %1686 = vmatpush.msra.mxu0 0.0
        %1687 = vmatpush.msra.mxu0 0.0
        %1688 = vmatpush.msra.mxu0 %v1659
        %1689 = vmatpush.msra.mxu0 %v1657
        %1690 = vmatmul.f32.gmra.mxu0 %v1663
        %v1691 = vpop.f32.mrf.mxu0
        %v1692 = vadd.f32 0.0, %v1691
        %1693 = vmatmul.f32.gmra.mxu0 %v1666
        %v1694 = vpop.f32.mrf.mxu0
        %v1695 = vadd.f32 0.0, %v1694
        %1696 = vmatmul.f32.gmra.mxu0 %v1669
        %v1697 = vpop.f32.mrf.mxu0
        %v1698 = vadd.f32 0.0, %v1697
        %1699 = vmatmul.f32.gmra.mxu0 %v1672
        %v1700 = vpop.f32.mrf.mxu0
        %v1701 = vadd.f32 0.0, %v1700
        %1702 = vdwg.mxu0
        %v1703 = vadd.f32 %v1647, %v1692
        %v1704 = vadd.f32 %v1648, %v1695
        %v1705 = vadd.f32 %v1649, %v1698
        %v1706 = vadd.f32 %v1650, %v1701
        %s1707 = scalar_lea.vmem %s4, 224
        %v1708 = vld [vmem:[%s1707] sm:$0xff]
        %v1709 = vld [vmem:[%s1707 + $0x8] sm:$0xff]
        %v1710 = vld [vmem:[%s1707 + $0x10] sm:$0xff]
        %v1711 = vld [vmem:[%s1707 + $0x18] sm:$0xff]
        %1712 = vrot.lane.b32.xlu0 %v1322, 121
        %v1713 = vpop.permute.xlu0 %1712
        %1714 = vrot.lane.b32.xlu0 %v1325, 121
        %v1715 = vpop.permute.xlu0 %1714
        %v1719 = vsel %vm1344, %v1708, 0
        %v1722 = vsel %vm1344, %v1709, 0
        %v1725 = vsel %vm1344, %v1710, 0
        %v1728 = vsel %vm1344, %v1711, 0
        %1730 = vmatpush.msra.mxu0 0.0
        %1731 = vmatpush.msra.mxu0 0.0
        %1732 = vmatpush.msra.mxu0 0.0
        %1733 = vmatpush.msra.mxu0 0.0
        %1734 = vmatpush.msra.mxu0 0.0
        %1735 = vmatpush.msra.mxu0 0.0
        %1736 = vmatpush.msra.mxu0 0.0
        %1737 = vmatpush.msra.mxu0 0.0
        %1738 = vmatpush.msra.mxu0 0.0
        %1739 = vmatpush.msra.mxu0 0.0
        %1740 = vmatpush.msra.mxu0 0.0
        %1741 = vmatpush.msra.mxu0 0.0
        %1742 = vmatpush.msra.mxu0 0.0
        %1743 = vmatpush.msra.mxu0 0.0
        %1744 = vmatpush.msra.mxu0 %v1715
        %1745 = vmatpush.msra.mxu0 %v1713
        %1746 = vmatmul.f32.gmra.mxu0 %v1719
        %v1747 = vpop.f32.mrf.mxu0
        %v1748 = vadd.f32 0.0, %v1747
        %1749 = vmatmul.f32.gmra.mxu0 %v1722
        %v1750 = vpop.f32.mrf.mxu0
        %v1751 = vadd.f32 0.0, %v1750
        %1752 = vmatmul.f32.gmra.mxu0 %v1725
        %v1753 = vpop.f32.mrf.mxu0
        %v1754 = vadd.f32 0.0, %v1753
        %1755 = vmatmul.f32.gmra.mxu0 %v1728
        %v1756 = vpop.f32.mrf.mxu0
        %v1757 = vadd.f32 0.0, %v1756
        %1758 = vdwg.mxu0
        %v1759 = vadd.f32 %v1703, %v1748
        %v1760 = vadd.f32 %v1704, %v1751
        %v1761 = vadd.f32 %v1705, %v1754
        %v1762 = vadd.f32 %v1706, %v1757
        %s1763 = scalar_lea.vmem %s4, 256
        %v1764 = vld [vmem:[%s1763] sm:$0xff]
        %v1765 = vld [vmem:[%s1763 + $0x8] sm:$0xff]
        %v1766 = vld [vmem:[%s1763 + $0x10] sm:$0xff]
        %v1767 = vld [vmem:[%s1763 + $0x18] sm:$0xff]
        %1768 = vrot.lane.b32.xlu0 %v1322, 120
        %v1769 = vpop.permute.xlu0 %1768
        %1770 = vrot.lane.b32.xlu0 %v1325, 120
        %v1771 = vpop.permute.xlu0 %1770
        %v1775 = vsel %vm1344, %v1764, 0
        %v1778 = vsel %vm1344, %v1765, 0
        %v1781 = vsel %vm1344, %v1766, 0
        %v1784 = vsel %vm1344, %v1767, 0
        %1786 = vmatpush.msra.mxu0 0.0
        %1787 = vmatpush.msra.mxu0 0.0
        %1788 = vmatpush.msra.mxu0 0.0
        %1789 = vmatpush.msra.mxu0 0.0
        %1790 = vmatpush.msra.mxu0 0.0
        %1791 = vmatpush.msra.mxu0 0.0
        %1792 = vmatpush.msra.mxu0 0.0
        %1793 = vmatpush.msra.mxu0 0.0
        %1794 = vmatpush.msra.mxu0 0.0
        %1795 = vmatpush.msra.mxu0 0.0
        %1796 = vmatpush.msra.mxu0 0.0
        %1797 = vmatpush.msra.mxu0 0.0
        %1798 = vmatpush.msra.mxu0 0.0
        %1799 = vmatpush.msra.mxu0 0.0
        %1800 = vmatpush.msra.mxu0 %v1771
        %1801 = vmatpush.msra.mxu0 %v1769
        %1802 = vmatmul.f32.gmra.mxu0 %v1775
        %v1803 = vpop.f32.mrf.mxu0
        %v1804 = vadd.f32 0.0, %v1803
        %1805 = vmatmul.f32.gmra.mxu0 %v1778
        %v1806 = vpop.f32.mrf.mxu0
        %v1807 = vadd.f32 0.0, %v1806
        %1808 = vmatmul.f32.gmra.mxu0 %v1781
        %v1809 = vpop.f32.mrf.mxu0
        %v1810 = vadd.f32 0.0, %v1809
        %1811 = vmatmul.f32.gmra.mxu0 %v1784
        %v1812 = vpop.f32.mrf.mxu0
        %v1813 = vadd.f32 0.0, %v1812
        %1814 = vdwg.mxu0
        %v1815 = vadd.f32 %v1759, %v1804
        %v1816 = vadd.f32 %v1760, %v1807
        %v1817 = vadd.f32 %v1761, %v1810
        %v1818 = vadd.f32 %v1762, %v1813
        %v1819 = vld [vmem:[%s5] sm:$0xff]
        %v1820 = vld [vmem:[%s5 + $0x8] sm:$0xff]
        %v1821 = vld [vmem:[%s5 + $0x10] sm:$0xff]
        %v1822 = vld [vmem:[%s5 + $0x18] sm:$0xff]
        %1824 = vset.pattern.permute.xlu0 0
        %1825 = vperm.xlu0 %1824, %v1819
        %v1826 = vpop.permute.xlu0 %1825
        %1829 = vset.pattern.permute.xlu0 0
        %1830 = vperm.xlu0 %1829, %v1820
        %v1831 = vpop.permute.xlu0 %1830
        %1834 = vset.pattern.permute.xlu0 0
        %1835 = vperm.xlu0 %1834, %v1821
        %v1836 = vpop.permute.xlu0 %1835
        %1839 = vset.pattern.permute.xlu0 0
        %1840 = vperm.xlu0 %1839, %v1822
        %v1841 = vpop.permute.xlu0 %1840
        %v1843 = vadd.f32 %v1815, %v1826
        %v1844 = vadd.f32 %v1816, %v1831
        %v1845 = vadd.f32 %v1817, %v1836
        %v1846 = vadd.f32 %v1818, %v1841
        %v1847 = vmax.f32 %v1843, 0.0
        %v1848 = vmax.f32 %v1844, 0.0
        %v1849 = vmax.f32 %v1845, 0.0
        %v1850 = vmax.f32 %v1846, 0.0
        %1855 = vrot.lane.b32.xlu0 %v1847, 127
        %v1856 = vpop.permute.xlu0 %1855
        %1857 = vrot.lane.b32.xlu0 %v1848, 127
        %v1858 = vpop.permute.xlu0 %1857
        %1859 = vrot.lane.b32.xlu0 %v1849, 127
        %v1860 = vpop.permute.xlu0 %1859
        %1861 = vrot.lane.b32.xlu0 %v1850, 127
        %v1862 = vpop.permute.xlu0 %1861
        %1867 = vrot.lane.b32.xlu0 %v1847, 87
        %v1868 = vpop.permute.xlu0 %1867
        %1869 = vrot.lane.b32.xlu0 %v1848, 87
        %v1870 = vpop.permute.xlu0 %1869
        %1871 = vrot.lane.b32.xlu0 %v1849, 87
        %v1872 = vpop.permute.xlu0 %1871
        %1873 = vrot.lane.b32.xlu0 %v1850, 87
        %v1874 = vpop.permute.xlu0 %1873
        %vm1879 = vcmask 711680
        %v1880 = vsel %vm1879, %v1856, %v1868
        %v1881 = vsel %vm1879, %v1858, %v1870
        %v1882 = vsel %vm1879, %v1860, %v1872
        %v1883 = vsel %vm1879, %v1862, %v1874
        %v1884 = vmax.f32 %v1847, %v1880
        %v1885 = vmax.f32 %v1848, %v1881
        %v1886 = vmax.f32 %v1849, %v1882
        %v1887 = vmax.f32 %v1850, %v1883
        %v1888 = vld [vmem:[%s7] sm:$0xff]
        %v1889 = vld [vmem:[%s7 + $0x8] sm:$0xff]
        %v1890 = vld [vmem:[%s7 + $0x10] sm:$0xff]
        %v1891 = vld [vmem:[%s7 + $0x18] sm:$0xff]
        %v1892 = vld [vmem:[%s7 + $0x20] sm:$0xff]
        %v1893 = vld [vmem:[%s7 + $0x28] sm:$0xff]
        %v1894 = vld [vmem:[%s7 + $0x30] sm:$0xff]
        %v1895 = vld [vmem:[%s7 + $0x38] sm:$0xff]
        %v1896 = vld [vmem:[%s7 + $0x40] sm:$0xff]
        %v1897 = vld [vmem:[%s7 + $0x48] sm:$0xff]
        %v1898 = vld [vmem:[%s7 + $0x50] sm:$0xff]
        %vm1899 = vcmask 719872
        %v1901 = vsel %vm1899, %v1884, 0
        %v1904 = vsel %vm1899, %v1885, 0
        %v1907 = vsel %vm1899, %v1886, 0
        %v1910 = vsel %vm1899, %v1887, 0
        %1912 = vmatpush.msra.mxu0 0.0
        %1913 = vmatpush.msra.mxu0 0.0
        %1914 = vmatpush.msra.mxu0 0.0
        %1915 = vmatpush.msra.mxu0 0.0
        %1916 = vmatpush.msra.mxu0 0.0
        %1917 = vmatpush.msra.mxu0 %v1898
        %1918 = vmatpush.msra.mxu0 %v1897
        %1919 = vmatpush.msra.mxu0 %v1896
        %1920 = vmatpush.msra.mxu0 %v1895
        %1921 = vmatpush.msra.mxu0 %v1894
        %1922 = vmatpush.msra.mxu0 %v1893
        %1923 = vmatpush.msra.mxu0 %v1892
        %1924 = vmatpush.msra.mxu0 %v1891
        %1925 = vmatpush.msra.mxu0 %v1890
        %1926 = vmatpush.msra.mxu0 %v1889
        %1927 = vmatpush.msra.mxu0 %v1888
        %1928 = vmatmul.f32.gmra.mxu0 %v1901
        %v1929 = vpop.f32.mrf.mxu0
        %v1930 = vadd.f32 0.0, %v1929
        %1931 = vmatmul.f32.gmra.mxu0 %v1904
        %v1932 = vpop.f32.mrf.mxu0
        %v1933 = vadd.f32 0.0, %v1932
        %1934 = vmatmul.f32.gmra.mxu0 %v1907
        %v1935 = vpop.f32.mrf.mxu0
        %v1936 = vadd.f32 0.0, %v1935
        %1937 = vmatmul.f32.gmra.mxu0 %v1910
        %v1938 = vpop.f32.mrf.mxu0
        %v1939 = vadd.f32 0.0, %v1938
        %1940 = vdwg.mxu0
        %v1942 = vrot.slane %v1930, 1
        %1943 = vrot.lane.b32.xlu0 %v1942, 44
        %v1944 = vpop.permute.xlu0 %1943
        %v1946 = vrot.slane %v1930, 2
        %1947 = vrot.lane.b32.xlu0 %v1946, 88
        %v1948 = vpop.permute.xlu0 %1947
        %v1950 = vrot.slane %v1930, 3
        %1951 = vrot.lane.b32.xlu0 %v1950, 4
        %v1952 = vpop.permute.xlu0 %1951
        %v1954 = vrot.slane %v1930, 4
        %1955 = vrot.lane.b32.xlu0 %v1954, 48
        %v1956 = vpop.permute.xlu0 %1955
        %v1958 = vrot.slane %v1930, 5
        %1959 = vrot.lane.b32.xlu0 %v1958, 92
        %v1960 = vpop.permute.xlu0 %1959
        %v1962 = vrot.slane %v1930, 6
        %1963 = vrot.lane.b32.xlu0 %v1962, 8
        %v1964 = vpop.permute.xlu0 %1963
        %v1966 = vrot.slane %v1930, 7
        %1967 = vrot.lane.b32.xlu0 %v1966, 52
        %v1968 = vpop.permute.xlu0 %1967
        %1971 = vrot.lane.b32.xlu0 %v1933, 96
        %v1972 = vpop.permute.xlu0 %1971
        %v1974 = vrot.slane %v1933, 1
        %1975 = vrot.lane.b32.xlu0 %v1974, 12
        %v1976 = vpop.permute.xlu0 %1975
        %v1978 = vrot.slane %v1933, 2
        %1979 = vrot.lane.b32.xlu0 %v1978, 56
        %v1980 = vpop.permute.xlu0 %1979
        %v1982 = vrot.slane %v1933, 3
        %1983 = vrot.lane.b32.xlu0 %v1982, 100
        %v1984 = vpop.permute.xlu0 %1983
        %v1986 = vrot.slane %v1933, 4
        %1987 = vrot.lane.b32.xlu0 %v1986, 16
        %v1988 = vpop.permute.xlu0 %1987
        %v1990 = vrot.slane %v1933, 5
        %1991 = vrot.lane.b32.xlu0 %v1990, 60
        %v1992 = vpop.permute.xlu0 %1991
        %v1994 = vrot.slane %v1933, 6
        %1995 = vrot.lane.b32.xlu0 %v1994, 104
        %v1996 = vpop.permute.xlu0 %1995
        %v1998 = vrot.slane %v1933, 7
        %1999 = vrot.lane.b32.xlu0 %v1998, 20
        %v2000 = vpop.permute.xlu0 %1999
        %vm2002 = vcmask 359424
        %v2003 = vsel %vm2002, %v1930, %v1944
        %v2004 = vsel %vm1899, %v2003, %v1948
        %vm2005 = vcmask 31744
        %v2006 = vsel %vm2005, %v1948, %v1952
        %vm2007 = vcmask 392192
        %v2008 = vsel %vm2007, %v2006, %v1956
        %vm2009 = vcmask 752640
        %v2010 = vsel %vm2009, %v2008, %v1960
        %vm2011 = vcmask 64512
        %v2012 = vsel %vm2011, %v1960, %v1964
        %vm2013 = vcmask 424960
        %v2014 = vsel %vm2013, %v2012, %v1968
        %vm2015 = vcmask 785408
        %v2016 = vsel %vm2015, %v2014, %v1972
        %vm2017 = vcmask 97280
        %v2018 = vsel %vm2017, %v1972, %v1976
        %vm2019 = vcmask 457728
        %v2020 = vsel %vm2019, %v2018, %v1980
        %vm2021 = vcmask 818176
        %v2022 = vsel %vm2021, %v2020, %v1984
        %v2023 = vsel %vm1344, %v1984, %v1988
        %vm2024 = vcmask 490496
        %v2025 = vsel %vm2024, %v2023, %v1992
        %vm2026 = vcmask 850944
        %v2027 = vsel %vm2026, %v2025, %v1996
        %vm2028 = vcmask 162816
        %v2029 = vsel %vm2028, %v1996, %v2000
        %v2031 = vrot.slane %v1936, 1
        %2032 = vrot.lane.b32.xlu0 %v2031, 44
        %v2033 = vpop.permute.xlu0 %2032
        %v2035 = vrot.slane %v1936, 2
        %2036 = vrot.lane.b32.xlu0 %v2035, 88
        %v2037 = vpop.permute.xlu0 %2036
        %v2039 = vrot.slane %v1936, 3
        %2040 = vrot.lane.b32.xlu0 %v2039, 4
        %v2041 = vpop.permute.xlu0 %2040
        %v2043 = vrot.slane %v1936, 4
        %2044 = vrot.lane.b32.xlu0 %v2043, 48
        %v2045 = vpop.permute.xlu0 %2044
        %v2047 = vrot.slane %v1936, 5
        %2048 = vrot.lane.b32.xlu0 %v2047, 92
        %v2049 = vpop.permute.xlu0 %2048
        %v2051 = vrot.slane %v1936, 6
        %2052 = vrot.lane.b32.xlu0 %v2051, 8
        %v2053 = vpop.permute.xlu0 %2052
        %v2055 = vrot.slane %v1936, 7
        %2056 = vrot.lane.b32.xlu0 %v2055, 52
        %v2057 = vpop.permute.xlu0 %2056
        %2060 = vrot.lane.b32.xlu0 %v1939, 96
        %v2061 = vpop.permute.xlu0 %2060
        %v2063 = vrot.slane %v1939, 1
        %2064 = vrot.lane.b32.xlu0 %v2063, 12
        %v2065 = vpop.permute.xlu0 %2064
        %v2067 = vrot.slane %v1939, 2
        %2068 = vrot.lane.b32.xlu0 %v2067, 56
        %v2069 = vpop.permute.xlu0 %2068
        %v2071 = vrot.slane %v1939, 3
        %2072 = vrot.lane.b32.xlu0 %v2071, 100
        %v2073 = vpop.permute.xlu0 %2072
        %v2075 = vrot.slane %v1939, 4
        %2076 = vrot.lane.b32.xlu0 %v2075, 16
        %v2077 = vpop.permute.xlu0 %2076
        %v2079 = vrot.slane %v1939, 5
        %2080 = vrot.lane.b32.xlu0 %v2079, 60
        %v2081 = vpop.permute.xlu0 %2080
        %v2083 = vrot.slane %v1939, 6
        %2084 = vrot.lane.b32.xlu0 %v2083, 104
        %v2085 = vpop.permute.xlu0 %2084
        %v2087 = vrot.slane %v1939, 7
        %2088 = vrot.lane.b32.xlu0 %v2087, 20
        %v2089 = vpop.permute.xlu0 %2088
        %v2091 = vsel %vm2002, %v1936, %v2033
        %v2092 = vsel %vm1899, %v2091, %v2037
        %v2093 = vsel %vm2005, %v2037, %v2041
        %v2094 = vsel %vm2007, %v2093, %v2045
        %v2095 = vsel %vm2009, %v2094, %v2049
        %v2096 = vsel %vm2011, %v2049, %v2053
        %v2097 = vsel %vm2013, %v2096, %v2057
        %v2098 = vsel %vm2015, %v2097, %v2061
        %v2099 = vsel %vm2017, %v2061, %v2065
        %v2100 = vsel %vm2019, %v2099, %v2069
        %v2101 = vsel %vm2021, %v2100, %v2073
        %v2102 = vsel %vm1344, %v2073, %v2077
        %v2103 = vsel %vm2024, %v2102, %v2081
        %v2104 = vsel %vm2026, %v2103, %v2085
        %v2105 = vsel %vm2028, %v2085, %v2089
        %2112 = vrot.lane.b32.xlu0 %v2092, 64
        %v2113 = vpop.permute.xlu0 %2112
        %2114 = vrot.lane.b32.xlu0 %v2095, 64
        %v2115 = vpop.permute.xlu0 %2114
        %2116 = vrot.lane.b32.xlu0 %v2098, 64
        %v2117 = vpop.permute.xlu0 %2116
        %2118 = vrot.lane.b32.xlu0 %v2101, 64
        %v2119 = vpop.permute.xlu0 %2118
        %2120 = vrot.lane.b32.xlu0 %v2104, 64
        %v2121 = vpop.permute.xlu0 %2120
        %2122 = vrot.lane.b32.xlu0 %v2105, 64
        %v2123 = vpop.permute.xlu0 %2122
        %v2124 = vsel %vm1274, %v2113, %v2115
        %v2125 = vsel %vm1274, %v2115, %v2117
        %v2126 = vsel %vm1274, %v2117, %v2119
        %v2127 = vsel %vm1274, %v2119, %v2121
        %v2128 = vsel %vm1274, %v2121, %v2123
        %v2135 = vsel %vm1274, %v2029, %v2113
        %v2136 = vld [vmem:[%s427] sm:$0xff]
        %v2137 = vld [vmem:[%s427 + $0x8] sm:$0x7]
        %v2140 = vperm.slane %v2136, 0
        %v2141 = vperm.slane %v2136, 1
        %v2142 = vperm.slane %v2136, 2
        %v2143 = vperm.slane %v2136, 3
        %v2144 = vperm.slane %v2136, 4
        %v2145 = vperm.slane %v2136, 5
        %v2146 = vperm.slane %v2136, 6
        %v2147 = vperm.slane %v2136, 7
        %v2148 = vperm.slane %v2137, 0
        %v2149 = vperm.slane %v2137, 1
        %v2150 = vperm.slane %v2137, 2
        %v2162 = vadd.f32 %v2004, %v2140
        %v2163 = vadd.f32 %v2010, %v2141
        %v2164 = vadd.f32 %v2016, %v2142
        %v2165 = vadd.f32 %v2022, %v2143
        %v2166 = vadd.f32 %v2027, %v2144
        %v2167 = vadd.f32 %v2135, %v2145
        %v2168 = vadd.f32 %v2124, %v2146
        %v2169 = vadd.f32 %v2125, %v2147
        %v2170 = vadd.f32 %v2126, %v2148
        %v2171 = vadd.f32 %v2127, %v2149
        %v2172 = vadd.f32 %v2128, %v2150
        %v2173 = vld [vmem:[%s8] sm:$0xff]
        %v2174 = vld [vmem:[%s8 + $0x8] sm:$0xff]
        %v2175 = vld [vmem:[%s8 + $0x10] sm:$0xff]
        %v2176 = vld [vmem:[%s8 + $0x18] sm:$0xff]
        %v2177 = vld [vmem:[%s8 + $0x20] sm:$0xff]
        %v2178 = vld [vmem:[%s8 + $0x28] sm:$0xff]
        %v2179 = vld [vmem:[%s8 + $0x30] sm:$0xff]
        %v2180 = vld [vmem:[%s8 + $0x38] sm:$0xff]
        %v2181 = vld [vmem:[%s8 + $0x40] sm:$0xff]
        %v2182 = vld [vmem:[%s8 + $0x48] sm:$0xff]
        %v2183 = vld [vmem:[%s8 + $0x50] sm:$0xff]
        %v2184 = vld [vmem:[%s8 + $0x58] sm:$0xff]
        %v2185 = vld [vmem:[%s8 + $0x60] sm:$0xff]
        %v2186 = vld [vmem:[%s8 + $0x68] sm:$0xff]
        %v2187 = vld [vmem:[%s8 + $0x70] sm:$0xff]
        %v2188 = vld [vmem:[%s8 + $0x78] sm:$0xff]
        %v2189 = vld [vmem:[%s8 + $0x80] sm:$0xff]
        %v2190 = vld [vmem:[%s8 + $0x88] sm:$0xff]
        %v2191 = vld [vmem:[%s8 + $0x90] sm:$0xff]
        %v2192 = vld [vmem:[%s8 + $0x98] sm:$0xff]
        %v2193 = vld [vmem:[%s8 + $0xa0] sm:$0xff]
        %v2194 = vld [vmem:[%s8 + $0xa8] sm:$0xff]
        %v2195 = vld [vmem:[%s8 + $0xb0] sm:$0xff]
        %v2196 = vld [vmem:[%s8 + $0xb8] sm:$0xff]
        %v2197 = vld [vmem:[%s8 + $0xc0] sm:$0xff]
        %v2198 = vld [vmem:[%s8 + $0xc8] sm:$0xff]
        %v2199 = vld [vmem:[%s8 + $0xd0] sm:$0xff]
        %v2200 = vld [vmem:[%s8 + $0xd8] sm:$0xff]
        %v2201 = vld [vmem:[%s8 + $0xe0] sm:$0xff]
        %v2202 = vld [vmem:[%s8 + $0xe8] sm:$0xff]
        %v2203 = vld [vmem:[%s8 + $0xf0] sm:$0xff]
        %v2204 = vld [vmem:[%s8 + $0xf8] sm:$0xff]
        %v2205 = vld [vmem:[%s8 + $0x100] sm:$0xff]
        %v2206 = vld [vmem:[%s8 + $0x108] sm:$0xff]
        %v2207 = vld [vmem:[%s8 + $0x110] sm:$0xff]
        %v2208 = vld [vmem:[%s8 + $0x118] sm:$0xff]
        %v2209 = vld [vmem:[%s8 + $0x120] sm:$0xff]
        %v2210 = vld [vmem:[%s8 + $0x128] sm:$0xff]
        %v2211 = vld [vmem:[%s8 + $0x130] sm:$0xff]
        %v2212 = vld [vmem:[%s8 + $0x138] sm:$0xff]
        %v2213 = vld [vmem:[%s8 + $0x140] sm:$0xff]
        %v2214 = vld [vmem:[%s8 + $0x148] sm:$0xff]
        %v2215 = vld [vmem:[%s8 + $0x150] sm:$0xff]
        %v2216 = vld [vmem:[%s8 + $0x158] sm:$0xff]
        %v2217 = vld [vmem:[%s8 + $0x160] sm:$0xff]
        %v2218 = vld [vmem:[%s8 + $0x168] sm:$0xff]
        %v2219 = vld [vmem:[%s8 + $0x170] sm:$0xff]
        %v2220 = vld [vmem:[%s8 + $0x178] sm:$0xff]
        %v2221 = vld [vmem:[%s8 + $0x180] sm:$0xff]
        %v2222 = vld [vmem:[%s8 + $0x188] sm:$0xff]
        %v2223 = vld [vmem:[%s8 + $0x190] sm:$0xff]
        %v2224 = vld [vmem:[%s8 + $0x198] sm:$0xff]
        %v2225 = vld [vmem:[%s8 + $0x1a0] sm:$0xff]
        %v2226 = vld [vmem:[%s8 + $0x1a8] sm:$0xff]
        %v2227 = vld [vmem:[%s8 + $0x1b0] sm:$0xff]
        %v2228 = vld [vmem:[%s8 + $0x1b8] sm:$0xff]
        %v2229 = vld [vmem:[%s8 + $0x1c0] sm:$0xff]
        %v2230 = vld [vmem:[%s8 + $0x1c8] sm:$0xff]
        %v2231 = vld [vmem:[%s8 + $0x1d0] sm:$0xff]
        %v2232 = vld [vmem:[%s8 + $0x1d8] sm:$0xff]
        %v2233 = vld [vmem:[%s8 + $0x1e0] sm:$0xff]
        %v2234 = vld [vmem:[%s8 + $0x1e8] sm:$0xff]
        %v2235 = vld [vmem:[%s8 + $0x1f0] sm:$0xff]
        %v2236 = vld [vmem:[%s8 + $0x1f8] sm:$0xff]
        %v2237 = vld [vmem:[%s8 + $0x200] sm:$0xff]
        %v2238 = vld [vmem:[%s8 + $0x208] sm:$0xff]
        %v2239 = vld [vmem:[%s8 + $0x210] sm:$0xff]
        %v2240 = vld [vmem:[%s8 + $0x218] sm:$0xff]
        %v2241 = vld [vmem:[%s8 + $0x220] sm:$0xff]
        %v2242 = vld [vmem:[%s8 + $0x228] sm:$0xff]
        %v2243 = vld [vmem:[%s8 + $0x230] sm:$0xff]
        %v2244 = vld [vmem:[%s8 + $0x238] sm:$0xff]
        %v2245 = vld [vmem:[%s8 + $0x240] sm:$0xff]
        %v2246 = vld [vmem:[%s8 + $0x248] sm:$0xff]
        %v2247 = vld [vmem:[%s8 + $0x250] sm:$0xff]
        %v2248 = vld [vmem:[%s8 + $0x258] sm:$0xff]
        %v2249 = vld [vmem:[%s8 + $0x260] sm:$0xff]
        %v2250 = vld [vmem:[%s8 + $0x268] sm:$0xff]
        %v2251 = vld [vmem:[%s8 + $0x270] sm:$0xff]
        %v2252 = vld [vmem:[%s8 + $0x278] sm:$0xff]
        %v2253 = vld [vmem:[%s8 + $0x280] sm:$0xff]
        %v2254 = vld [vmem:[%s8 + $0x288] sm:$0xff]
        %v2255 = vld [vmem:[%s8 + $0x290] sm:$0xff]
        %v2256 = vld [vmem:[%s8 + $0x298] sm:$0xff]
        %v2257 = vld [vmem:[%s8 + $0x2a0] sm:$0xff]
        %v2258 = vld [vmem:[%s8 + $0x2a8] sm:$0xff]
        %v2259 = vld [vmem:[%s8 + $0x2b0] sm:$0xff]
        %v2260 = vld [vmem:[%s8 + $0x2b8] sm:$0xff]
        %v2261 = vld [vmem:[%s8 + $0x2c0] sm:$0xff]
        %v2262 = vld [vmem:[%s8 + $0x2c8] sm:$0xff]
        %v2263 = vld [vmem:[%s8 + $0x2d0] sm:$0xff]
        %v2264 = vld [vmem:[%s8 + $0x2d8] sm:$0xff]
        %v2265 = vld [vmem:[%s8 + $0x2e0] sm:$0xff]
        %v2266 = vld [vmem:[%s8 + $0x2e8] sm:$0xff]
        %v2267 = vld [vmem:[%s8 + $0x2f0] sm:$0xff]
        %v2268 = vld [vmem:[%s8 + $0x2f8] sm:$0xff]
        %v2269 = vld [vmem:[%s8 + $0x300] sm:$0xff]
        %v2270 = vld [vmem:[%s8 + $0x308] sm:$0xff]
        %v2271 = vld [vmem:[%s8 + $0x310] sm:$0xff]
        %v2272 = vld [vmem:[%s8 + $0x318] sm:$0xff]
        %v2273 = vld [vmem:[%s8 + $0x320] sm:$0xff]
        %v2274 = vld [vmem:[%s8 + $0x328] sm:$0xff]
        %v2275 = vld [vmem:[%s8 + $0x330] sm:$0xff]
        %v2276 = vld [vmem:[%s8 + $0x338] sm:$0xff]
        %v2277 = vld [vmem:[%s8 + $0x340] sm:$0xff]
        %v2278 = vld [vmem:[%s8 + $0x348] sm:$0xff]
        %v2279 = vld [vmem:[%s8 + $0x350] sm:$0xff]
        %v2280 = vld [vmem:[%s8 + $0x358] sm:$0xff]
        %v2281 = vld [vmem:[%s8 + $0x360] sm:$0xff]
        %v2282 = vld [vmem:[%s8 + $0x368] sm:$0xff]
        %v2283 = vld [vmem:[%s8 + $0x370] sm:$0xff]
        %v2284 = vld [vmem:[%s8 + $0x378] sm:$0xff]
        %v2285 = vld [vmem:[%s8 + $0x380] sm:$0xff]
        %v2286 = vld [vmem:[%s8 + $0x388] sm:$0xff]
        %v2287 = vld [vmem:[%s8 + $0x390] sm:$0xff]
        %v2288 = vld [vmem:[%s8 + $0x398] sm:$0xff]
        %v2289 = vld [vmem:[%s8 + $0x3a0] sm:$0xff]
        %v2290 = vld [vmem:[%s8 + $0x3a8] sm:$0xff]
        %v2291 = vld [vmem:[%s8 + $0x3b0] sm:$0xff]
        %v2292 = vld [vmem:[%s8 + $0x3b8] sm:$0xff]
        %v2293 = vld [vmem:[%s8 + $0x3c0] sm:$0xff]
        %v2294 = vld [vmem:[%s8 + $0x3c8] sm:$0xff]
        %v2295 = vld [vmem:[%s8 + $0x3d0] sm:$0xff]
        %v2296 = vld [vmem:[%s8 + $0x3d8] sm:$0xff]
        %v2297 = vld [vmem:[%s8 + $0x3e0] sm:$0xff]
        %v2298 = vld [vmem:[%s8 + $0x3e8] sm:$0xff]
        %v2299 = vld [vmem:[%s8 + $0x3f0] sm:$0xff]
        %v2300 = vld [vmem:[%s8 + $0x3f8] sm:$0xff]
        %v2301 = vld [vmem:[%s8 + $0x400] sm:$0xff]
        %v2302 = vld [vmem:[%s8 + $0x408] sm:$0xff]
        %v2303 = vld [vmem:[%s8 + $0x410] sm:$0xff]
        %v2304 = vld [vmem:[%s8 + $0x418] sm:$0xff]
        %v2305 = vld [vmem:[%s8 + $0x420] sm:$0xff]
        %v2306 = vld [vmem:[%s8 + $0x428] sm:$0xff]
        %v2307 = vld [vmem:[%s8 + $0x430] sm:$0xff]
        %v2308 = vld [vmem:[%s8 + $0x438] sm:$0xff]
        %v2309 = vld [vmem:[%s8 + $0x440] sm:$0xff]
        %v2310 = vld [vmem:[%s8 + $0x448] sm:$0xff]
        %v2311 = vld [vmem:[%s8 + $0x450] sm:$0xff]
        %v2312 = vld [vmem:[%s8 + $0x458] sm:$0xff]
        %v2313 = vld [vmem:[%s8 + $0x460] sm:$0xff]
        %v2314 = vld [vmem:[%s8 + $0x468] sm:$0xff]
        %v2315 = vld [vmem:[%s8 + $0x470] sm:$0xff]
        %v2316 = vld [vmem:[%s8 + $0x478] sm:$0xff]
        %v2317 = vld [vmem:[%s8 + $0x480] sm:$0xff]
        %v2318 = vld [vmem:[%s8 + $0x488] sm:$0xff]
        %v2319 = vld [vmem:[%s8 + $0x490] sm:$0xff]
        %v2320 = vld [vmem:[%s8 + $0x498] sm:$0xff]
        %v2321 = vld [vmem:[%s8 + $0x4a0] sm:$0xff]
        %v2322 = vld [vmem:[%s8 + $0x4a8] sm:$0xff]
        %v2323 = vld [vmem:[%s8 + $0x4b0] sm:$0xff]
        %v2324 = vld [vmem:[%s8 + $0x4b8] sm:$0xff]
        %v2325 = vld [vmem:[%s8 + $0x4c0] sm:$0xff]
        %v2326 = vld [vmem:[%s8 + $0x4c8] sm:$0xff]
        %v2327 = vld [vmem:[%s8 + $0x4d0] sm:$0xff]
        %v2328 = vld [vmem:[%s8 + $0x4d8] sm:$0xff]
        %v2329 = vld [vmem:[%s8 + $0x4e0] sm:$0xff]
        %v2330 = vld [vmem:[%s8 + $0x4e8] sm:$0xff]
        %v2331 = vld [vmem:[%s8 + $0x4f0] sm:$0xff]
        %v2332 = vld [vmem:[%s8 + $0x4f8] sm:$0xff]
        %v2333 = vld [vmem:[%s8 + $0x500] sm:$0xff]
        %v2334 = vld [vmem:[%s8 + $0x508] sm:$0xff]
        %v2335 = vld [vmem:[%s8 + $0x510] sm:$0xff]
        %v2336 = vld [vmem:[%s8 + $0x518] sm:$0xff]
        %v2337 = vld [vmem:[%s8 + $0x520] sm:$0xff]
        %v2338 = vld [vmem:[%s8 + $0x528] sm:$0xff]
        %v2339 = vld [vmem:[%s8 + $0x530] sm:$0xff]
        %v2340 = vld [vmem:[%s8 + $0x538] sm:$0xff]
        %v2341 = vld [vmem:[%s8 + $0x540] sm:$0xff]
        %v2342 = vld [vmem:[%s8 + $0x548] sm:$0xff]
        %v2343 = vld [vmem:[%s8 + $0x550] sm:$0xff]
        %v2344 = vld [vmem:[%s8 + $0x558] sm:$0xff]
        %v2345 = vld [vmem:[%s8 + $0x560] sm:$0xff]
        %v2346 = vld [vmem:[%s8 + $0x568] sm:$0xff]
        %v2347 = vld [vmem:[%s8 + $0x570] sm:$0xff]
        %v2348 = vld [vmem:[%s8 + $0x578] sm:$0xff]
        %v2349 = vld [vmem:[%s9] sm:$0x1]
        %2350 = vmatpush.msra.mxu0 %v2188
        %2351 = vmatpush.msra.mxu0 %v2187
        %2352 = vmatpush.msra.mxu0 %v2186
        %2353 = vmatpush.msra.mxu0 %v2185
        %2354 = vmatpush.msra.mxu0 %v2184
        %2355 = vmatpush.msra.mxu0 %v2183
        %2356 = vmatpush.msra.mxu0 %v2182
        %2357 = vmatpush.msra.mxu0 %v2181
        %2358 = vmatpush.msra.mxu0 %v2180
        %2359 = vmatpush.msra.mxu0 %v2179
        %2360 = vmatpush.msra.mxu0 %v2178
        %2361 = vmatpush.msra.mxu0 %v2177
        %2362 = vmatpush.msra.mxu0 %v2176
        %2363 = vmatpush.msra.mxu0 %v2175
        %2364 = vmatpush.msra.mxu0 %v2174
        %2365 = vmatpush.msra.mxu0 %v2173
        %2366 = vmatmul.f32.gmra.mxu0 %v2162
        %v2367 = vpop.f32.mrf.mxu0
        %v2368 = vadd.f32 %v2349, %v2367
        %2369 = vdwg.mxu0
        %2370 = vmatpush.msra.mxu0 %v2204
        %2371 = vmatpush.msra.mxu0 %v2203
        %2372 = vmatpush.msra.mxu0 %v2202
        %2373 = vmatpush.msra.mxu0 %v2201
        %2374 = vmatpush.msra.mxu0 %v2200
        %2375 = vmatpush.msra.mxu0 %v2199
        %2376 = vmatpush.msra.mxu0 %v2198
        %2377 = vmatpush.msra.mxu0 %v2197
        %2378 = vmatpush.msra.mxu0 %v2196
        %2379 = vmatpush.msra.mxu0 %v2195
        %2380 = vmatpush.msra.mxu0 %v2194
        %2381 = vmatpush.msra.mxu0 %v2193
        %2382 = vmatpush.msra.mxu0 %v2192
        %2383 = vmatpush.msra.mxu0 %v2191
        %2384 = vmatpush.msra.mxu0 %v2190
        %2385 = vmatpush.msra.mxu0 %v2189
        %2386 = vmatmul.f32.gmra.mxu0 %v2163
        %v2387 = vpop.f32.mrf.mxu0
        %v2388 = vadd.f32 %v2368, %v2387
        %2389 = vdwg.mxu0
        %2390 = vmatpush.msra.mxu0 %v2220
        %2391 = vmatpush.msra.mxu0 %v2219
        %2392 = vmatpush.msra.mxu0 %v2218
        %2393 = vmatpush.msra.mxu0 %v2217
        %2394 = vmatpush.msra.mxu0 %v2216
        %2395 = vmatpush.msra.mxu0 %v2215
        %2396 = vmatpush.msra.mxu0 %v2214
        %2397 = vmatpush.msra.mxu0 %v2213
        %2398 = vmatpush.msra.mxu0 %v2212
        %2399 = vmatpush.msra.mxu0 %v2211
        %2400 = vmatpush.msra.mxu0 %v2210
        %2401 = vmatpush.msra.mxu0 %v2209
        %2402 = vmatpush.msra.mxu0 %v2208
        %2403 = vmatpush.msra.mxu0 %v2207
        %2404 = vmatpush.msra.mxu0 %v2206
        %2405 = vmatpush.msra.mxu0 %v2205
        %2406 = vmatmul.f32.gmra.mxu0 %v2164
        %v2407 = vpop.f32.mrf.mxu0
        %v2408 = vadd.f32 %v2388, %v2407
        %2409 = vdwg.mxu0
        %2410 = vmatpush.msra.mxu0 %v2236
        %2411 = vmatpush.msra.mxu0 %v2235
        %2412 = vmatpush.msra.mxu0 %v2234
        %2413 = vmatpush.msra.mxu0 %v2233
        %2414 = vmatpush.msra.mxu0 %v2232
        %2415 = vmatpush.msra.mxu0 %v2231
        %2416 = vmatpush.msra.mxu0 %v2230
        %2417 = vmatpush.msra.mxu0 %v2229
        %2418 = vmatpush.msra.mxu0 %v2228
        %2419 = vmatpush.msra.mxu0 %v2227
        %2420 = vmatpush.msra.mxu0 %v2226
        %2421 = vmatpush.msra.mxu0 %v2225
        %2422 = vmatpush.msra.mxu0 %v2224
        %2423 = vmatpush.msra.mxu0 %v2223
        %2424 = vmatpush.msra.mxu0 %v2222
        %2425 = vmatpush.msra.mxu0 %v2221
        %2426 = vmatmul.f32.gmra.mxu0 %v2165
        %v2427 = vpop.f32.mrf.mxu0
        %v2428 = vadd.f32 %v2408, %v2427
        %2429 = vdwg.mxu0
        %2430 = vmatpush.msra.mxu0 %v2252
        %2431 = vmatpush.msra.mxu0 %v2251
        %2432 = vmatpush.msra.mxu0 %v2250
        %2433 = vmatpush.msra.mxu0 %v2249
        %2434 = vmatpush.msra.mxu0 %v2248
        %2435 = vmatpush.msra.mxu0 %v2247
        %2436 = vmatpush.msra.mxu0 %v2246
        %2437 = vmatpush.msra.mxu0 %v2245
        %2438 = vmatpush.msra.mxu0 %v2244
        %2439 = vmatpush.msra.mxu0 %v2243
        %2440 = vmatpush.msra.mxu0 %v2242
        %2441 = vmatpush.msra.mxu0 %v2241
        %2442 = vmatpush.msra.mxu0 %v2240
        %2443 = vmatpush.msra.mxu0 %v2239
        %2444 = vmatpush.msra.mxu0 %v2238
        %2445 = vmatpush.msra.mxu0 %v2237
        %2446 = vmatmul.f32.gmra.mxu0 %v2166
        %v2447 = vpop.f32.mrf.mxu0
        %v2448 = vadd.f32 %v2428, %v2447
        %2449 = vdwg.mxu0
        %2450 = vmatpush.msra.mxu0 %v2268
        %2451 = vmatpush.msra.mxu0 %v2267
        %2452 = vmatpush.msra.mxu0 %v2266
        %2453 = vmatpush.msra.mxu0 %v2265
        %2454 = vmatpush.msra.mxu0 %v2264
        %2455 = vmatpush.msra.mxu0 %v2263
        %2456 = vmatpush.msra.mxu0 %v2262
        %2457 = vmatpush.msra.mxu0 %v2261
        %2458 = vmatpush.msra.mxu0 %v2260
        %2459 = vmatpush.msra.mxu0 %v2259
        %2460 = vmatpush.msra.mxu0 %v2258
        %2461 = vmatpush.msra.mxu0 %v2257
        %2462 = vmatpush.msra.mxu0 %v2256
        %2463 = vmatpush.msra.mxu0 %v2255
        %2464 = vmatpush.msra.mxu0 %v2254
        %2465 = vmatpush.msra.mxu0 %v2253
        %2466 = vmatmul.f32.gmra.mxu0 %v2167
        %v2467 = vpop.f32.mrf.mxu0
        %v2468 = vadd.f32 %v2448, %v2467
        %2469 = vdwg.mxu0
        %2470 = vmatpush.msra.mxu0 %v2284
        %2471 = vmatpush.msra.mxu0 %v2283
        %2472 = vmatpush.msra.mxu0 %v2282
        %2473 = vmatpush.msra.mxu0 %v2281
        %2474 = vmatpush.msra.mxu0 %v2280
        %2475 = vmatpush.msra.mxu0 %v2279
        %2476 = vmatpush.msra.mxu0 %v2278
        %2477 = vmatpush.msra.mxu0 %v2277
        %2478 = vmatpush.msra.mxu0 %v2276
        %2479 = vmatpush.msra.mxu0 %v2275
        %2480 = vmatpush.msra.mxu0 %v2274
        %2481 = vmatpush.msra.mxu0 %v2273
        %2482 = vmatpush.msra.mxu0 %v2272
        %2483 = vmatpush.msra.mxu0 %v2271
        %2484 = vmatpush.msra.mxu0 %v2270
        %2485 = vmatpush.msra.mxu0 %v2269
        %2486 = vmatmul.f32.gmra.mxu0 %v2168
        %v2487 = vpop.f32.mrf.mxu0
        %v2488 = vadd.f32 %v2468, %v2487
        %2489 = vdwg.mxu0
        %2490 = vmatpush.msra.mxu0 %v2300
        %2491 = vmatpush.msra.mxu0 %v2299
        %2492 = vmatpush.msra.mxu0 %v2298
        %2493 = vmatpush.msra.mxu0 %v2297
        %2494 = vmatpush.msra.mxu0 %v2296
        %2495 = vmatpush.msra.mxu0 %v2295
        %2496 = vmatpush.msra.mxu0 %v2294
        %2497 = vmatpush.msra.mxu0 %v2293
        %2498 = vmatpush.msra.mxu0 %v2292
        %2499 = vmatpush.msra.mxu0 %v2291
        %2500 = vmatpush.msra.mxu0 %v2290
        %2501 = vmatpush.msra.mxu0 %v2289
        %2502 = vmatpush.msra.mxu0 %v2288
        %2503 = vmatpush.msra.mxu0 %v2287
        %2504 = vmatpush.msra.mxu0 %v2286
        %2505 = vmatpush.msra.mxu0 %v2285
        %2506 = vmatmul.f32.gmra.mxu0 %v2169
        %v2507 = vpop.f32.mrf.mxu0
        %v2508 = vadd.f32 %v2488, %v2507
        %2509 = vdwg.mxu0
        %2510 = vmatpush.msra.mxu0 %v2316
        %2511 = vmatpush.msra.mxu0 %v2315
        %2512 = vmatpush.msra.mxu0 %v2314
        %2513 = vmatpush.msra.mxu0 %v2313
        %2514 = vmatpush.msra.mxu0 %v2312
        %2515 = vmatpush.msra.mxu0 %v2311
        %2516 = vmatpush.msra.mxu0 %v2310
        %2517 = vmatpush.msra.mxu0 %v2309
        %2518 = vmatpush.msra.mxu0 %v2308
        %2519 = vmatpush.msra.mxu0 %v2307
        %2520 = vmatpush.msra.mxu0 %v2306
        %2521 = vmatpush.msra.mxu0 %v2305
        %2522 = vmatpush.msra.mxu0 %v2304
        %2523 = vmatpush.msra.mxu0 %v2303
        %2524 = vmatpush.msra.mxu0 %v2302
        %2525 = vmatpush.msra.mxu0 %v2301
        %2526 = vmatmul.f32.gmra.mxu0 %v2170
        %v2527 = vpop.f32.mrf.mxu0
        %v2528 = vadd.f32 %v2508, %v2527
        %2529 = vdwg.mxu0
        %2530 = vmatpush.msra.mxu0 %v2332
        %2531 = vmatpush.msra.mxu0 %v2331
        %2532 = vmatpush.msra.mxu0 %v2330
        %2533 = vmatpush.msra.mxu0 %v2329
        %2534 = vmatpush.msra.mxu0 %v2328
        %2535 = vmatpush.msra.mxu0 %v2327
        %2536 = vmatpush.msra.mxu0 %v2326
        %2537 = vmatpush.msra.mxu0 %v2325
        %2538 = vmatpush.msra.mxu0 %v2324
        %2539 = vmatpush.msra.mxu0 %v2323
        %2540 = vmatpush.msra.mxu0 %v2322
        %2541 = vmatpush.msra.mxu0 %v2321
        %2542 = vmatpush.msra.mxu0 %v2320
        %2543 = vmatpush.msra.mxu0 %v2319
        %2544 = vmatpush.msra.mxu0 %v2318
        %2545 = vmatpush.msra.mxu0 %v2317
        %2546 = vmatmul.f32.gmra.mxu0 %v2171
        %v2547 = vpop.f32.mrf.mxu0
        %v2548 = vadd.f32 %v2528, %v2547
        %2549 = vdwg.mxu0
        %2550 = vmatpush.msra.mxu0 %v2348
        %2551 = vmatpush.msra.mxu0 %v2347
        %2552 = vmatpush.msra.mxu0 %v2346
        %2553 = vmatpush.msra.mxu0 %v2345
        %2554 = vmatpush.msra.mxu0 %v2344
        %2555 = vmatpush.msra.mxu0 %v2343
        %2556 = vmatpush.msra.mxu0 %v2342
        %2557 = vmatpush.msra.mxu0 %v2341
        %2558 = vmatpush.msra.mxu0 %v2340
        %2559 = vmatpush.msra.mxu0 %v2339
        %2560 = vmatpush.msra.mxu0 %v2338
        %2561 = vmatpush.msra.mxu0 %v2337
        %2562 = vmatpush.msra.mxu0 %v2336
        %2563 = vmatpush.msra.mxu0 %v2335
        %2564 = vmatpush.msra.mxu0 %v2334
        %2565 = vmatpush.msra.mxu0 %v2333
        %2566 = vmatmul.f32.gmra.mxu0 %v2172
        %v2567 = vpop.f32.mrf.mxu0
        %v2568 = vadd.f32 %v2548, %v2567
        %2569 = vdwg.mxu0
        %v2570 = vmax.f32 %v2568, 0.0
        %v2571 = vld [vmem:[%s10] sm:$0xff]
        %v2572 = vld [vmem:[%s10 + $0x8] sm:$0xff]
        %v2573 = vld [vmem:[%s10 + $0x10] sm:$0xff]
        %v2574 = vld [vmem:[%s10 + $0x18] sm:$0xff]
        %v2575 = vld [vmem:[%s10 + $0x20] sm:$0xff]
        %v2576 = vld [vmem:[%s10 + $0x28] sm:$0xff]
        %v2577 = vld [vmem:[%s10 + $0x30] sm:$0xff]
        %v2578 = vld [vmem:[%s10 + $0x38] sm:$0xff]
        %v2579 = vld [vmem:[%s11] sm:$0x1]
        %v2581 = vsel %vm1274, %v2570, 0
        %2583 = vmatpush.msra.mxu0 0.0
        %2584 = vmatpush.msra.mxu0 0.0
        %2585 = vmatpush.msra.mxu0 0.0
        %2586 = vmatpush.msra.mxu0 0.0
        %2587 = vmatpush.msra.mxu0 0.0
        %2588 = vmatpush.msra.mxu0 0.0
        %2589 = vmatpush.msra.mxu0 0.0
        %2590 = vmatpush.msra.mxu0 0.0
        %2591 = vmatpush.msra.mxu0 %v2578
        %2592 = vmatpush.msra.mxu0 %v2577
        %2593 = vmatpush.msra.mxu0 %v2576
        %2594 = vmatpush.msra.mxu0 %v2575
        %2595 = vmatpush.msra.mxu0 %v2574
        %2596 = vmatpush.msra.mxu0 %v2573
        %2597 = vmatpush.msra.mxu0 %v2572
        %2598 = vmatpush.msra.mxu0 %v2571
        %2599 = vmatmul.f32.gmra.mxu0 %v2581
        %v2600 = vpop.f32.mrf.mxu0
        %v2601 = vadd.f32 %v2579, %v2600
        %2602 = vdwg.mxu0
        %vm2603 = vcmask 73728
        %2604 = vst.msk [vmem:[%s418] sm:$0x1] %vm2603, %v2601
        %s2605 = sand.u32 %s296, 1
        %s2606 = scalar_lea.sflag [#allocation3], %s2605
        %s2607 = sand.u32 %s296, 1
        %s2608 = scalar_lea.vmem [#allocation2], %s2607
        // Predicated region
        $region69: #{pamap_forward.1} parent=67 // pred_check
          %p2609 = pneg %p306
        $region70: #{pamap_forward.1} parent=67 // pred_check_branch
          %2611 = sbr.rel (%p2609) target = $region72
        $region71: #{pamap_forward.1} parent=67 // pred_region
          %2613 = vsyncadd %s2606, 0
          %s2614 = scalar_lea.hbm %s12, %s26
          %s2616 = sshll.u32 %s2608, 4
          %s2617 = int_to_ptr.vmem [resolvable:$true] %s2616
          %s2618 = sshll.u32 %s2614, 4
          %s2619 = int_to_ptr.hbm [resolvable:$true] %s2618
          %2621 = dma.vmem_to_hbm [thread:$0]  %s2617, 16, %s2619, %s2606
        $region72: #{pamap_forward.1} parent=67 // pred_fallthru
          _
      $region68: #{pamap_forward.1} parent=5 // pred_fallthru
        _
      %p2622 = scmp.le.s32.totalorder 2, %s21
      // Predicated region
      $region73: #{pamap_forward.1} parent=5 // pred_check
        %p2623 = pneg %p2622
      $region74: #{pamap_forward.1} parent=5 // pred_check_branch
        %2625 = sbr.rel (%p2623) target = $region76
      $region75: #{pamap_forward.1} parent=5 // pred_region
        %s2626 = ssub.s32 %s21, 2
        // Predicated region
        $region77: #{pamap_forward.1} parent=75 // pred_check
          %p2627 = pneg %p312
        $region78: #{pamap_forward.1} parent=75 // pred_check_branch
          %2629 = sbr.rel (%p2627) target = $region80
        $region79: #{pamap_forward.1} parent=75 // pred_region
          %s2630 = sand.u32 %s297, 1
          %s2631 = scalar_lea.sflag [#allocation3], %s2630
          %s2632 = sand.u32 %s297, 1
          %s2633 = scalar_lea.vmem [#allocation2], %s2632
          %2635 = dma.done %s2631, 16
        $region80: #{pamap_forward.1} parent=75 // pred_fallthru
          _
      $region76: #{pamap_forward.1} parent=5 // pred_fallthru
        _
    $region6: #{pamap_forward.1} parent=1 // loop_footer
      %s25 = sadd.s32 1, %s21
    $region7: #{pamap_forward.1} parent=1 // loop_footer_branch
      %20 = sbr.rel target = $region3
    $region8: #{pamap_forward.1} parent=1 // loop_exit
      _
    %2636 = vsyncpa [#allocation3], 1
    %s2637 = scalar_lea.sflag [#allocation3], 1
    %2638 = vsyncpa %s2637, 1

</llo_original>
